<compile_context>
chip_gen: v7x
topology: tpu7x:2x2x1
jax: 0.10.0
libtpu: 0.0.40
codegen_flags: <defaults>
</compile_context>

<pallas_src>
import functools

import jax
import jax.numpy as jnp
from jax.experimental import pallas as pl
from jax.experimental.pallas import tpu as pltpu

D_IN = 784     # 28*28 input pixels (also output pixels after the upsample)
D_HID = 300
D_OUT = 49     # 7*7 grid before the 4x4 repeat_interleave upsample
_BN_EPS = 1e-5


def _round_up(n, m):
    return ((n + m - 1) // m) * m


def _upsample_src_indices():
    # output pixel p = 28*i + j of the 28x28 image comes from source pixel
    # (i//4)*7 + (j//4) of the 7x7 grid  (== repeat_interleave(4, dim=1/2)).
    p = jnp.arange(D_IN)
    i, j = p // 28, p % 28
    return (i // 4) * 7 + (j // 4)          # (784,) int32


# -----------------------------------------------------------------------------
# fused kernel: fc1 + bn1 + relu + fc2 + bn2 + relu + (fc3 folded with upsample)
# -----------------------------------------------------------------------------
def _mlp_patch_kernel(x_ref, w1_ref, b1_ref, s1_ref, t1_ref,
                      w2_ref, b2_ref, s2_ref, t2_ref,
                      w3_ref, b3_ref, out_ref):
    bf16 = jnp.bfloat16
    # fc1 + bn1 + relu        (TM,784) @ (784,300), f32 accumulation
    h = jnp.dot(x_ref[...].astype(bf16), w1_ref[...],
                preferred_element_type=jnp.float32) + b1_ref[...]
    h = jnp.maximum(h * s1_ref[...] + t1_ref[...], 0.0)
    # fc2 + bn2 + relu        (TM,300) @ (300,300)
    h = jnp.dot(h.astype(bf16), w2_ref[...],
                preferred_element_type=jnp.float32) + b2_ref[...]
    h = jnp.maximum(h * s2_ref[...] + t2_ref[...], 0.0)
    # fc3 folded with the 4x4 repeat_interleave upsample: (TM,300) @ (300,784)
    out_ref[...] = jnp.dot(h.astype(bf16), w3_ref[...],
                           preferred_element_type=jnp.float32) + b3_ref[...]


@functools.partial(jax.jit, static_argnames=("block_b",))
def big_mnist_patch_selector_forward(x, params, *, block_b=256):
    x = x.reshape(x.shape[0], -1).astype(jnp.float32)   # torch.flatten(x, 1)
    assert x.shape[1] == D_IN, "expected 784 flattened input features"
    B = x.shape[0]

    # --- fold BN (eval-mode running stats) into per-feature scale/shift -----
    s1 = params["bn1_gamma"] * jax.lax.rsqrt(params["bn1_var"] + _BN_EPS)
    t1 = params["bn1_beta"] - params["bn1_mean"] * s1
    s2 = params["bn2_gamma"] * jax.lax.rsqrt(params["bn2_var"] + _BN_EPS)
    t2 = params["bn2_beta"] - params["bn2_mean"] * s2

    # --- fold repeat_interleave into fc3 (exact: a column gather) -----------
    src = _upsample_src_indices()
    w3_eff = jnp.take(params["w3"], src, axis=1)         # (300, 784)
    b3_eff = jnp.take(params["b3"], src)                 # (784,)

    # MXU operands in bf16 (f32 accumulation happens inside the kernel).
    w1 = params["w1"].astype(jnp.bfloat16)
    w2 = params["w2"].astype(jnp.bfloat16)
    w3 = w3_eff.astype(jnp.bfloat16)

    # --- batch tiling --------------------------------------------------------
    TM = block_b if B >= block_b else _round_up(B, 8)
    Bp = _round_up(B, TM)
    if Bp != B:
        x = jnp.pad(x, ((0, Bp - B), (0, 0)))
    grid = (Bp // TM,)

    def resident(shape):
        return pl.BlockSpec(shape, lambda i: (0, 0))

    out = pl.pallas_call(
        _mlp_patch_kernel,
        grid=grid,
        in_specs=[
            pl.BlockSpec((TM, D_IN), lambda i: (i, 0)),     # x tile (streams)
            resident((D_IN, D_HID)),                        # w1
            resident((1, D_HID)),                           # b1
            resident((1, D_HID)),                           # bn1 scale
            resident((1, D_HID)),                           # bn1 shift
            resident((D_HID, D_HID)),                       # w2
            resident((1, D_HID)),                           # b2
            resident((1, D_HID)),                           # bn2 scale
            resident((1, D_HID)),                           # bn2 shift
            resident((D_HID, D_IN)),                        # w3 (upsample-folded)
            resident((1, D_IN)),                            # b3 (upsample-folded)
        ],
        out_specs=pl.BlockSpec((TM, D_IN), lambda i: (i, 0)),
        out_shape=jax.ShapeDtypeStruct((Bp, D_IN), jnp.float32),
        compiler_params=pltpu.CompilerParams(
            dimension_semantics=("parallel",),
            vmem_limit_bytes=32 * 1024 * 1024,
        ),
    )(
        x,
        w1, params["b1"].reshape(1, D_HID).astype(jnp.float32),
        s1.reshape(1, D_HID), t1.reshape(1, D_HID),
        w2, params["b2"].reshape(1, D_HID).astype(jnp.float32),
        s2.reshape(1, D_HID), t2.reshape(1, D_HID),
        w3, b3_eff.reshape(1, D_IN).astype(jnp.float32),
    )
    return out[:B]


class BigMnistPatchSelectorJax:
    """JAX/Pallas port of the PyTorch BigMnistPatchSelector (eval-mode BN)."""

    def __init__(self, params):
        self.params = params

    def __call__(self, x):
        return big_mnist_patch_selector_forward(x, self.params)


# -----------------------------------------------------------------------------
# pure-JAX references
# -----------------------------------------------------------------------------
def reference_forward_f32(x, p):
    h = x.reshape(x.shape[0], -1)
    h = h @ p["w1"] + p["b1"]
    h = (h - p["bn1_mean"]) * jax.lax.rsqrt(p["bn1_var"] + _BN_EPS) \
        * p["bn1_gamma"] + p["bn1_beta"]
    h = jnp.maximum(h, 0.0)
    h = h @ p["w2"] + p["b2"]
    h = (h - p["bn2_mean"]) * jax.lax.rsqrt(p["bn2_var"] + _BN_EPS) \
        * p["bn2_gamma"] + p["bn2_beta"]
    h = jnp.maximum(h, 0.0)
    y = (h @ p["w3"] + p["b3"]).reshape(-1, 7, 7)
    y = jnp.repeat(jnp.repeat(y, 4, axis=1), 4, axis=2)
    return y.reshape(-1, D_IN)


def reference_forward_bf16(x, p):
    # mirrors the kernel's bf16 operand casts (f32 accumulation) exactly
    bf16 = jnp.bfloat16
    s1 = p["bn1_gamma"] * jax.lax.rsqrt(p["bn1_var"] + _BN_EPS)
    t1 = p["bn1_beta"] - p["bn1_mean"] * s1
    s2 = p["bn2_gamma"] * jax.lax.rsqrt(p["bn2_var"] + _BN_EPS)
    t2 = p["bn2_beta"] - p["bn2_mean"] * s2
    h = x.reshape(x.shape[0], -1)
    h = jnp.dot(h.astype(bf16), p["w1"].astype(bf16),
                preferred_element_type=jnp.float32) + p["b1"]
    h = jnp.maximum(h * s1 + t1, 0.0)
    h = jnp.dot(h.astype(bf16), p["w2"].astype(bf16),
                preferred_element_type=jnp.float32) + p["b2"]
    h = jnp.maximum(h * s2 + t2, 0.0)
    y = jnp.dot(h.astype(bf16), p["w3"].astype(bf16),
                preferred_element_type=jnp.float32) + p["b3"]
    y = jnp.repeat(jnp.repeat(y.reshape(-1, 7, 7), 4, axis=1), 4, axis=2)
    return y.reshape(-1, D_IN)


if __name__ == "__main__":
    key = jax.random.PRNGKey(0)
    keys = jax.random.split(key, 16)

    B = 8
    x = jax.random.normal(keys[0], (B, 1, 28, 28), jnp.float32)

    def linear_init(kw, kb, fan_in, fan_out):
        bound = 1.0 / float(fan_in) ** 0.5
        w = jax.random.uniform(kw, (fan_in, fan_out), jnp.float32, -bound, bound)
        b = jax.random.uniform(kb, (fan_out,), jnp.float32, -bound, bound)
        return w, b

    w1, b1 = linear_init(keys[1], keys[2], D_IN, D_HID)
    w2, b2 = linear_init(keys[3], keys[4], D_HID, D_HID)
    w3, b3 = linear_init(keys[5], keys[6], D_HID, D_OUT)

    params = dict(
        w1=w1, b1=b1,
        bn1_gamma=1.0 + 0.1 * jax.random.normal(keys[7], (D_HID,), jnp.float32),
        bn1_beta=0.1 * jax.random.normal(keys[8], (D_HID,), jnp.float32),
        bn1_mean=0.1 * jax.random.normal(keys[9], (D_HID,), jnp.float32),
        bn1_var=jax.random.uniform(keys[10], (D_HID,), jnp.float32, 0.5, 1.5),
        w2=w2, b2=b2,
        bn2_gamma=1.0 + 0.1 * jax.random.normal(keys[11], (D_HID,), jnp.float32),
        bn2_beta=0.1 * jax.random.normal(keys[12], (D_HID,), jnp.float32),
        bn2_mean=0.1 * jax.random.normal(keys[13], (D_HID,), jnp.float32),
        bn2_var=jax.random.uniform(keys[14], (D_HID,), jnp.float32, 0.5, 1.5),
        w3=w3, b3=b3,
    )

    model = BigMnistPatchSelectorJax(params)
    out = model(x)
    out = jax.block_until_ready(out)
    assert out.shape == (B, D_IN)

    # the fc3/upsample fold is an exact column gather of the (B, 49) logits
    src = _upsample_src_indices()
    y49 = jax.random.normal(keys[15], (B, D_OUT), jnp.float32)
    up_ref = jnp.repeat(jnp.repeat(y49.reshape(-1, 7, 7), 4, axis=1),
                        4, axis=2).reshape(-1, D_IN)
    assert jnp.array_equal(up_ref, y49[:, src])

    # tight check vs a reference mirroring the kernel's bf16 operand casts,
    # loose check vs the pure-f32 PyTorch-equivalent forward.
    ref_bf16 = reference_forward_bf16(x, params)
    ref_f32 = reference_forward_f32(x, params)
    assert jnp.allclose(out, ref_bf16, rtol=1e-3, atol=1e-3)
    assert jnp.allclose(out, ref_f32, rtol=5e-2, atol=5e-2)
    assert bool(jnp.all(jnp.isfinite(out)))

    print("KERNEL_OK")
</pallas_src>

<mosaic_0001>
module attributes {stable_mosaic.version = 11 : i64} {
  func.func @_mlp_patch_kernel(%arg0: i32, %arg1: memref<8x784xf32, #tpu.memory_space<vmem>>, %arg2: memref<784x300xbf16, #tpu.memory_space<vmem>>, %arg3: memref<1x300xf32, #tpu.memory_space<vmem>>, %arg4: memref<1x300xf32, #tpu.memory_space<vmem>>, %arg5: memref<1x300xf32, #tpu.memory_space<vmem>>, %arg6: memref<300x300xbf16, #tpu.memory_space<vmem>>, %arg7: memref<1x300xf32, #tpu.memory_space<vmem>>, %arg8: memref<1x300xf32, #tpu.memory_space<vmem>>, %arg9: memref<1x300xf32, #tpu.memory_space<vmem>>, %arg10: memref<300x784xbf16, #tpu.memory_space<vmem>>, %arg11: memref<1x784xf32, #tpu.memory_space<vmem>>, %arg12: memref<8x784xf32, #tpu.memory_space<vmem>>) attributes {dimension_semantics = [#tpu.dimension_semantics<parallel>], iteration_bounds = array<i64: 1>, scalar_prefetch = 0 : i64, scratch_operands = 0 : i64, tpu.core_type = #tpu.core_type<tc>, window_params = [{transform_indices = @transform_0, window_bounds = array<i64: 8, 784>}, {pipeline_mode = #tpu.pipeline_mode<synchronous>, transform_indices = @transform_1, window_bounds = array<i64: 784, 300>}, {pipeline_mode = #tpu.pipeline_mode<synchronous>, transform_indices = @transform_2, window_bounds = array<i64: 1, 300>}, {pipeline_mode = #tpu.pipeline_mode<synchronous>, transform_indices = @transform_3, window_bounds = array<i64: 1, 300>}, {pipeline_mode = #tpu.pipeline_mode<synchronous>, transform_indices = @transform_4, window_bounds = array<i64: 1, 300>}, {pipeline_mode = #tpu.pipeline_mode<synchronous>, transform_indices = @transform_5, window_bounds = array<i64: 300, 300>}, {pipeline_mode = #tpu.pipeline_mode<synchronous>, transform_indices = @transform_6, window_bounds = array<i64: 1, 300>}, {pipeline_mode = #tpu.pipeline_mode<synchronous>, transform_indices = @transform_7, window_bounds = array<i64: 1, 300>}, {pipeline_mode = #tpu.pipeline_mode<synchronous>, transform_indices = @transform_8, window_bounds = array<i64: 1, 300>}, {pipeline_mode = #tpu.pipeline_mode<synchronous>, transform_indices = @transform_9, window_bounds = array<i64: 300, 784>}, {pipeline_mode = #tpu.pipeline_mode<synchronous>, transform_indices = @transform_10, window_bounds = array<i64: 1, 784>}, {transform_indices = @transform_11, window_bounds = array<i64: 8, 784>}]} {
    %c0 = arith.constant 0 : index
    %c0_0 = arith.constant 0 : index
    %0 = vector.load %arg1[%c0, %c0_0] : memref<8x784xf32, #tpu.memory_space<vmem>>, vector<8x784xf32>
    %1 = arith.truncf %0 : vector<8x784xf32> to vector<8x784xbf16>
    %c0_1 = arith.constant 0 : index
    %c0_2 = arith.constant 0 : index
    %2 = vector.load %arg2[%c0_1, %c0_2] : memref<784x300xbf16, #tpu.memory_space<vmem>>, vector<784x300xbf16>
    %cst = arith.constant dense<0.000000e+00> : vector<8x300xf32>
    %3 = tpu.matmul %1, %2, %cst {dimension_numbers = #tpu.dot_dimension_numbers<[1], [0], [0], [1], [0, 0, 1, 1], [], []>} : vector<8x784xbf16>, vector<784x300xbf16>, vector<8x300xf32> -> vector<8x300xf32>
    %c0_3 = arith.constant 0 : index
    %c0_4 = arith.constant 0 : index
    %4 = vector.load %arg3[%c0_3, %c0_4] : memref<1x300xf32, #tpu.memory_space<vmem>>, vector<1x300xf32>
    %5 = vector.broadcast %4 : vector<1x300xf32> to vector<8x300xf32>
    %6 = arith.addf %3, %5 : vector<8x300xf32>
    %c0_5 = arith.constant 0 : index
    %c0_6 = arith.constant 0 : index
    %7 = vector.load %arg4[%c0_5, %c0_6] : memref<1x300xf32, #tpu.memory_space<vmem>>, vector<1x300xf32>
    %8 = vector.broadcast %7 : vector<1x300xf32> to vector<8x300xf32>
    %9 = arith.mulf %6, %8 : vector<8x300xf32>
    %c0_7 = arith.constant 0 : index
    %c0_8 = arith.constant 0 : index
    %10 = vector.load %arg5[%c0_7, %c0_8] : memref<1x300xf32, #tpu.memory_space<vmem>>, vector<1x300xf32>
    %11 = vector.broadcast %10 : vector<1x300xf32> to vector<8x300xf32>
    %12 = arith.addf %9, %11 : vector<8x300xf32>
    %cst_9 = arith.constant 0.000000e+00 : f32
    %13 = vector.broadcast %cst_9 : f32 to vector<8x300xf32>
    %14 = arith.maximumf %12, %13 : vector<8x300xf32>
    %15 = arith.truncf %14 : vector<8x300xf32> to vector<8x300xbf16>
    %c0_10 = arith.constant 0 : index
    %c0_11 = arith.constant 0 : index
    %16 = vector.load %arg6[%c0_10, %c0_11] : memref<300x300xbf16, #tpu.memory_space<vmem>>, vector<300x300xbf16>
    %cst_12 = arith.constant dense<0.000000e+00> : vector<8x300xf32>
    %17 = tpu.matmul %15, %16, %cst_12 {dimension_numbers = #tpu.dot_dimension_numbers<[1], [0], [0], [1], [0, 0, 1, 1], [], []>} : vector<8x300xbf16>, vector<300x300xbf16>, vector<8x300xf32> -> vector<8x300xf32>
    %c0_13 = arith.constant 0 : index
    %c0_14 = arith.constant 0 : index
    %18 = vector.load %arg7[%c0_13, %c0_14] : memref<1x300xf32, #tpu.memory_space<vmem>>, vector<1x300xf32>
    %19 = vector.broadcast %18 : vector<1x300xf32> to vector<8x300xf32>
    %20 = arith.addf %17, %19 : vector<8x300xf32>
    %c0_15 = arith.constant 0 : index
    %c0_16 = arith.constant 0 : index
    %21 = vector.load %arg8[%c0_15, %c0_16] : memref<1x300xf32, #tpu.memory_space<vmem>>, vector<1x300xf32>
    %22 = vector.broadcast %21 : vector<1x300xf32> to vector<8x300xf32>
    %23 = arith.mulf %20, %22 : vector<8x300xf32>
    %c0_17 = arith.constant 0 : index
    %c0_18 = arith.constant 0 : index
    %24 = vector.load %arg9[%c0_17, %c0_18] : memref<1x300xf32, #tpu.memory_space<vmem>>, vector<1x300xf32>
    %25 = vector.broadcast %24 : vector<1x300xf32> to vector<8x300xf32>
    %26 = arith.addf %23, %25 : vector<8x300xf32>
    %cst_19 = arith.constant 0.000000e+00 : f32
    %27 = vector.broadcast %cst_19 : f32 to vector<8x300xf32>
    %28 = arith.maximumf %26, %27 : vector<8x300xf32>
    %29 = arith.truncf %28 : vector<8x300xf32> to vector<8x300xbf16>
    %c0_20 = arith.constant 0 : index
    %c0_21 = arith.constant 0 : index
    %30 = vector.load %arg10[%c0_20, %c0_21] : memref<300x784xbf16, #tpu.memory_space<vmem>>, vector<300x784xbf16>
    %cst_22 = arith.constant dense<0.000000e+00> : vector<8x784xf32>
    %31 = tpu.matmul %29, %30, %cst_22 {dimension_numbers = #tpu.dot_dimension_numbers<[1], [0], [0], [1], [0, 0, 1, 1], [], []>} : vector<8x300xbf16>, vector<300x784xbf16>, vector<8x784xf32> -> vector<8x784xf32>
    %c0_23 = arith.constant 0 : index
    %c0_24 = arith.constant 0 : index
    %32 = vector.load %arg11[%c0_23, %c0_24] : memref<1x784xf32, #tpu.memory_space<vmem>>, vector<1x784xf32>
    %33 = vector.broadcast %32 : vector<1x784xf32> to vector<8x784xf32>
    %34 = arith.addf %31, %33 : vector<8x784xf32>
    %c0_25 = arith.constant 0 : index
    %c0_26 = arith.constant 0 : index
    %35 = vector.load %arg12[%c0_25, %c0_26] : memref<8x784xf32, #tpu.memory_space<vmem>>, vector<8x784xf32>
    tpu.vector_store %arg12[%c0_25, %c0_26], %34 {strides = array<i32>} : memref<8x784xf32, #tpu.memory_space<vmem>>, vector<8x784xf32>,
    return
  }
  func.func @transform_0(%arg0: i32) -> (i32, i32) {
    %c0_i32 = arith.constant 0 : i32
    %c0_i32_0 = arith.constant 0 : i32
    return %arg0, %c0_i32 : i32, i32
  }
  func.func @transform_1(%arg0: i32) -> (i32, i32) {
    %c0_i32 = arith.constant 0 : i32
    %c0_i32_0 = arith.constant 0 : i32
    %c0_i32_1 = arith.constant 0 : i32
    return %c0_i32, %c0_i32_0 : i32, i32
  }
  func.func @transform_2(%arg0: i32) -> (i32, i32) {
    %c0_i32 = arith.constant 0 : i32
    %c0_i32_0 = arith.constant 0 : i32
    %c0_i32_1 = arith.constant 0 : i32
    return %c0_i32, %c0_i32_0 : i32, i32
  }
  func.func @transform_3(%arg0: i32) -> (i32, i32) {
    %c0_i32 = arith.constant 0 : i32
    %c0_i32_0 = arith.constant 0 : i32
    %c0_i32_1 = arith.constant 0 : i32
    return %c0_i32, %c0_i32_0 : i32, i32
  }
  func.func @transform_4(%arg0: i32) -> (i32, i32) {
    %c0_i32 = arith.constant 0 : i32
    %c0_i32_0 = arith.constant 0 : i32
    %c0_i32_1 = arith.constant 0 : i32
    return %c0_i32, %c0_i32_0 : i32, i32
  }
  func.func @transform_5(%arg0: i32) -> (i32, i32) {
    %c0_i32 = arith.constant 0 : i32
    %c0_i32_0 = arith.constant 0 : i32
    %c0_i32_1 = arith.constant 0 : i32
    return %c0_i32, %c0_i32_0 : i32, i32
  }
  func.func @transform_6(%arg0: i32) -> (i32, i32) {
    %c0_i32 = arith.constant 0 : i32
    %c0_i32_0 = arith.constant 0 : i32
    %c0_i32_1 = arith.constant 0 : i32
    return %c0_i32, %c0_i32_0 : i32, i32
  }
  func.func @transform_7(%arg0: i32) -> (i32, i32) {
    %c0_i32 = arith.constant 0 : i32
    %c0_i32_0 = arith.constant 0 : i32
    %c0_i32_1 = arith.constant 0 : i32
    return %c0_i32, %c0_i32_0 : i32, i32
  }
  func.func @transform_8(%arg0: i32) -> (i32, i32) {
    %c0_i32 = arith.constant 0 : i32
    %c0_i32_0 = arith.constant 0 : i32
    %c0_i32_1 = arith.constant 0 : i32
    return %c0_i32, %c0_i32_0 : i32, i32
  }
  func.func @transform_9(%arg0: i32) -> (i32, i32) {
    %c0_i32 = arith.constant 0 : i32
    %c0_i32_0 = arith.constant 0 : i32
    %c0_i32_1 = arith.constant 0 : i32
    return %c0_i32, %c0_i32_0 : i32, i32
  }
  func.func @transform_10(%arg0: i32) -> (i32, i32) {
    %c0_i32 = arith.constant 0 : i32
    %c0_i32_0 = arith.constant 0 : i32
    %c0_i32_1 = arith.constant 0 : i32
    return %c0_i32, %c0_i32_0 : i32, i32
  }
  func.func @transform_11(%arg0: i32) -> (i32, i32) {
    %c0_i32 = arith.constant 0 : i32
    %c0_i32_0 = arith.constant 0 : i32
    return %arg0, %c0_i32 : i32, i32
  }
}

</mosaic_0001>

<llo_original>
// kernel: big_mnist_patch_selector_forward.1
$region0: #{big_mnist_patch_selector_forward.1}
  #allocation0 [shape = 'u32[]', space=smem, size = 0x4, offset = 0x4, fixed_abs, tag = 'smem constant byte address 0x4 - core index']
  #allocation1 [shape = 'u32[144,128]{1,0:T(1,128)}', space=vmem, size = 0x12000, scoped, tag = 'internal scratch']
  %s0 = inlined_call_operand.vmem [shape: f32[8,784], index: 0, kind: input, shape index: {}]
  %s1 = inlined_call_operand.vmem [shape: bf16[784,300], index: 1, kind: input, shape index: {}]
  %s2 = inlined_call_operand.vmem [shape: f32[1,300], index: 2, kind: input, shape index: {}]
  %s3 = inlined_call_operand.vmem [shape: f32[1,300], index: 3, kind: input, shape index: {}]
  %s4 = inlined_call_operand.vmem [shape: f32[1,300], index: 4, kind: input, shape index: {}]
  %s5 = inlined_call_operand.vmem [shape: bf16[300,300], index: 5, kind: input, shape index: {}]
  %s6 = inlined_call_operand.vmem [shape: f32[1,300], index: 6, kind: input, shape index: {}]
  %s7 = inlined_call_operand.vmem [shape: f32[1,300], index: 7, kind: input, shape index: {}]
  %s8 = inlined_call_operand.vmem [shape: f32[1,300], index: 8, kind: input, shape index: {}]
  %s9 = inlined_call_operand.vmem [shape: bf16[300,784], index: 9, kind: input, shape index: {}]
  %s10 = inlined_call_operand.vmem [shape: f32[1,784], index: 10, kind: input, shape index: {}]
  %s11 = inlined_call_operand.hbm [shape: f32[8,784], index: 11, kind: output, shape index: {}]
  %s12 = sld [smem:[#allocation0]]
  $region54: #{big_mnist_patch_selector_forward.1} parent=0
    _
  %s14 = ssub.s32 1, %s12
  %s15 = scalar_select 0, %s14, %s12
  $region1: #{big_mnist_patch_selector_forward.1} parent=0
    #allocation2 [shape = 'u8[28672]{0}', space=vmem, size = 0x7000, scoped, tag = 'output window, operand 0, single buffered']
    #allocation3 [shape = 's32[1]{0}', space=sflag, size = 0x4, scoped, tag = 'scoped memory for big_mnist_patch_selector_forward.1']
    %16 = vsyncpa [#allocation3], 0
    // Predicated region
    $region2: #{big_mnist_patch_selector_forward.1} parent=1 // pred_check
      _
    $region3: #{big_mnist_patch_selector_forward.1} parent=1 // pred_check_branch
      %18 = sbr.rel (0) target = $region5
    $region4: #{big_mnist_patch_selector_forward.1} parent=1 // pred_region
      _
    $region5: #{big_mnist_patch_selector_forward.1} parent=1 // pred_fallthru
      _
    // Predicated region
    $region6: #{big_mnist_patch_selector_forward.1} parent=1 // pred_check
      _
    $region7: #{big_mnist_patch_selector_forward.1} parent=1 // pred_check_branch
      %20 = sbr.rel (0) target = $region9
    $region8: #{big_mnist_patch_selector_forward.1} parent=1 // pred_region
      _
    $region9: #{big_mnist_patch_selector_forward.1} parent=1 // pred_fallthru
      _
    // Predicated region
    $region10: #{big_mnist_patch_selector_forward.1} parent=1 // pred_check
      _
    $region11: #{big_mnist_patch_selector_forward.1} parent=1 // pred_check_branch
      %22 = sbr.rel (0) target = $region13
    $region12: #{big_mnist_patch_selector_forward.1} parent=1 // pred_region
      _
    $region13: #{big_mnist_patch_selector_forward.1} parent=1 // pred_fallthru
      _
    // Predicated region
    $region14: #{big_mnist_patch_selector_forward.1} parent=1 // pred_check
      _
    $region15: #{big_mnist_patch_selector_forward.1} parent=1 // pred_check_branch
      %24 = sbr.rel (0) target = $region17
    $region16: #{big_mnist_patch_selector_forward.1} parent=1 // pred_region
      _
    $region17: #{big_mnist_patch_selector_forward.1} parent=1 // pred_fallthru
      _
    // Predicated region
    $region18: #{big_mnist_patch_selector_forward.1} parent=1 // pred_check
      _
    $region19: #{big_mnist_patch_selector_forward.1} parent=1 // pred_check_branch
      %26 = sbr.rel (0) target = $region21
    $region20: #{big_mnist_patch_selector_forward.1} parent=1 // pred_region
      _
    $region21: #{big_mnist_patch_selector_forward.1} parent=1 // pred_fallthru
      _
    // Predicated region
    $region22: #{big_mnist_patch_selector_forward.1} parent=1 // pred_check
      _
    $region23: #{big_mnist_patch_selector_forward.1} parent=1 // pred_check_branch
      %28 = sbr.rel (0) target = $region25
    $region24: #{big_mnist_patch_selector_forward.1} parent=1 // pred_region
      _
    $region25: #{big_mnist_patch_selector_forward.1} parent=1 // pred_fallthru
      _
    // Predicated region
    $region26: #{big_mnist_patch_selector_forward.1} parent=1 // pred_check
      _
    $region27: #{big_mnist_patch_selector_forward.1} parent=1 // pred_check_branch
      %30 = sbr.rel (0) target = $region29
    $region28: #{big_mnist_patch_selector_forward.1} parent=1 // pred_region
      _
    $region29: #{big_mnist_patch_selector_forward.1} parent=1 // pred_fallthru
      _
    // Predicated region
    $region30: #{big_mnist_patch_selector_forward.1} parent=1 // pred_check
      _
    $region31: #{big_mnist_patch_selector_forward.1} parent=1 // pred_check_branch
      %32 = sbr.rel (0) target = $region33
    $region32: #{big_mnist_patch_selector_forward.1} parent=1 // pred_region
      _
    $region33: #{big_mnist_patch_selector_forward.1} parent=1 // pred_fallthru
      _
    // Predicated region
    $region34: #{big_mnist_patch_selector_forward.1} parent=1 // pred_check
      _
    $region35: #{big_mnist_patch_selector_forward.1} parent=1 // pred_check_branch
      %34 = sbr.rel (0) target = $region37
    $region36: #{big_mnist_patch_selector_forward.1} parent=1 // pred_region
      _
    $region37: #{big_mnist_patch_selector_forward.1} parent=1 // pred_fallthru
      _
    // Predicated region
    $region38: #{big_mnist_patch_selector_forward.1} parent=1 // pred_check
      _
    $region39: #{big_mnist_patch_selector_forward.1} parent=1 // pred_check_branch
      %36 = sbr.rel (0) target = $region41
    $region40: #{big_mnist_patch_selector_forward.1} parent=1 // pred_region
      _
    $region41: #{big_mnist_patch_selector_forward.1} parent=1 // pred_fallthru
      _
    // Predicated region
    $region42: #{big_mnist_patch_selector_forward.1} parent=1 // pred_check
      _
    $region43: #{big_mnist_patch_selector_forward.1} parent=1 // pred_check_branch
      %38 = sbr.rel (0) target = $region45
    $region44: #{big_mnist_patch_selector_forward.1} parent=1 // pred_region
      _
    $region45: #{big_mnist_patch_selector_forward.1} parent=1 // pred_fallthru
      _
    %v40 = vld [vmem:[%s0] sm:$0xff]
    %v41 = vld [vmem:[%s0 + $0x8] sm:$0xff]
    %v42 = vld [vmem:[%s0 + $0x10] sm:$0xff]
    %v43 = vld [vmem:[%s0 + $0x18] sm:$0xff]
    %v44 = vld [vmem:[%s0 + $0x20] sm:$0xff]
    %v45 = vld [vmem:[%s0 + $0x28] sm:$0xff]
    %v46 = vld [vmem:[%s0 + $0x30] sm:$0xff]
    %v47 = vpack.c.bf16 %v40, %v40
    %v48 = vpack.c.bf16 %v41, %v41
    %v49 = vpack.c.bf16 %v42, %v42
    %v50 = vpack.c.bf16 %v43, %v43
    %v51 = vpack.c.bf16 %v44, %v44
    %v52 = vpack.c.bf16 %v45, %v45
    %v53 = vpack.c.bf16 %v46, %v46
    %v54 = vld [vmem:[%s1] sm:$0xff]
    %v55 = vld [vmem:[%s1 + $0x8] sm:$0xf]
    %v56 = vld [vmem:[%s1 + $0xc] sm:$0xff]
    %v57 = vld [vmem:[%s1 + $0x14] sm:$0xf]
    %v58 = vld [vmem:[%s1 + $0x18] sm:$0xff]
    %v59 = vld [vmem:[%s1 + $0x20] sm:$0xf]
    %v60 = vld [vmem:[%s1 + $0x24] sm:$0xff]
    %v61 = vld [vmem:[%s1 + $0x2c] sm:$0xf]
    %v62 = vld [vmem:[%s1 + $0x30] sm:$0xff]
    %v63 = vld [vmem:[%s1 + $0x38] sm:$0xf]
    %v64 = vld [vmem:[%s1 + $0x3c] sm:$0xff]
    %v65 = vld [vmem:[%s1 + $0x44] sm:$0xf]
    %v66 = vld [vmem:[%s1 + $0x48] sm:$0xff]
    %v67 = vld [vmem:[%s1 + $0x50] sm:$0xf]
    %v68 = vld [vmem:[%s1 + $0x54] sm:$0xff]
    %v69 = vld [vmem:[%s1 + $0x5c] sm:$0xf]
    %v70 = vld [vmem:[%s1 + $0x60] sm:$0xff]
    %v71 = vld [vmem:[%s1 + $0x68] sm:$0xf]
    %v72 = vld [vmem:[%s1 + $0x6c] sm:$0xff]
    %v73 = vld [vmem:[%s1 + $0x74] sm:$0xf]
    %v74 = vld [vmem:[%s1 + $0x78] sm:$0xff]
    %v75 = vld [vmem:[%s1 + $0x80] sm:$0xf]
    %v76 = vld [vmem:[%s1 + $0x84] sm:$0xff]
    %v77 = vld [vmem:[%s1 + $0x8c] sm:$0xf]
    %v78 = vld [vmem:[%s1 + $0x90] sm:$0xff]
    %v79 = vld [vmem:[%s1 + $0x98] sm:$0xf]
    %v80 = vld [vmem:[%s1 + $0x9c] sm:$0xff]
    %v81 = vld [vmem:[%s1 + $0xa4] sm:$0xf]
    %v82 = vld [vmem:[%s1 + $0xa8] sm:$0xff]
    %v83 = vld [vmem:[%s1 + $0xb0] sm:$0xf]
    %v84 = vld [vmem:[%s1 + $0xb4] sm:$0xff]
    %v85 = vld [vmem:[%s1 + $0xbc] sm:$0xf]
    %v86 = vld [vmem:[%s1 + $0xc0] sm:$0xff]
    %v87 = vld [vmem:[%s1 + $0xc8] sm:$0xf]
    %v88 = vld [vmem:[%s1 + $0xcc] sm:$0xff]
    %v89 = vld [vmem:[%s1 + $0xd4] sm:$0xf]
    %v90 = vld [vmem:[%s1 + $0xd8] sm:$0xff]
    %v91 = vld [vmem:[%s1 + $0xe0] sm:$0xf]
    %v92 = vld [vmem:[%s1 + $0xe4] sm:$0xff]
    %v93 = vld [vmem:[%s1 + $0xec] sm:$0xf]
    %v94 = vld [vmem:[%s1 + $0xf0] sm:$0xff]
    %v95 = vld [vmem:[%s1 + $0xf8] sm:$0xf]
    %v96 = vld [vmem:[%s1 + $0xfc] sm:$0xff]
    %v97 = vld [vmem:[%s1 + $0x104] sm:$0xf]
    %v98 = vld [vmem:[%s1 + $0x108] sm:$0xff]
    %v99 = vld [vmem:[%s1 + $0x110] sm:$0xf]
    %v100 = vld [vmem:[%s1 + $0x114] sm:$0xff]
    %v101 = vld [vmem:[%s1 + $0x11c] sm:$0xf]
    %v102 = vld [vmem:[%s1 + $0x120] sm:$0xff]
    %v103 = vld [vmem:[%s1 + $0x128] sm:$0xf]
    %v104 = vld [vmem:[%s1 + $0x12c] sm:$0xff]
    %v105 = vld [vmem:[%s1 + $0x134] sm:$0xf]
    %v106 = vld [vmem:[%s1 + $0x138] sm:$0xff]
    %v107 = vld [vmem:[%s1 + $0x140] sm:$0xf]
    %v108 = vld [vmem:[%s1 + $0x144] sm:$0xff]
    %v109 = vld [vmem:[%s1 + $0x14c] sm:$0xf]
    %v110 = vld [vmem:[%s1 + $0x150] sm:$0xff]
    %v111 = vld [vmem:[%s1 + $0x158] sm:$0xf]
    %v112 = vld [vmem:[%s1 + $0x15c] sm:$0xff]
    %v113 = vld [vmem:[%s1 + $0x164] sm:$0xf]
    %v114 = vld [vmem:[%s1 + $0x168] sm:$0xff]
    %v115 = vld [vmem:[%s1 + $0x170] sm:$0xf]
    %v116 = vld [vmem:[%s1 + $0x174] sm:$0xff]
    %v117 = vld [vmem:[%s1 + $0x17c] sm:$0xf]
    %v118 = vld [vmem:[%s1 + $0x180] sm:$0xff]
    %v119 = vld [vmem:[%s1 + $0x188] sm:$0xf]
    %v120 = vld [vmem:[%s1 + $0x18c] sm:$0xff]
    %v121 = vld [vmem:[%s1 + $0x194] sm:$0xf]
    %v122 = vld [vmem:[%s1 + $0x198] sm:$0xff]
    %v123 = vld [vmem:[%s1 + $0x1a0] sm:$0xf]
    %v124 = vld [vmem:[%s1 + $0x1a4] sm:$0xff]
    %v125 = vld [vmem:[%s1 + $0x1ac] sm:$0xf]
    %v126 = vld [vmem:[%s1 + $0x1b0] sm:$0xff]
    %v127 = vld [vmem:[%s1 + $0x1b8] sm:$0xf]
    %v128 = vld [vmem:[%s1 + $0x1bc] sm:$0xff]
    %v129 = vld [vmem:[%s1 + $0x1c4] sm:$0xf]
    %v130 = vld [vmem:[%s1 + $0x1c8] sm:$0xff]
    %v131 = vld [vmem:[%s1 + $0x1d0] sm:$0xf]
    %v132 = vld [vmem:[%s1 + $0x1d4] sm:$0xff]
    %v133 = vld [vmem:[%s1 + $0x1dc] sm:$0xf]
    %v134 = vld [vmem:[%s1 + $0x1e0] sm:$0xff]
    %v135 = vld [vmem:[%s1 + $0x1e8] sm:$0xf]
    %v136 = vld [vmem:[%s1 + $0x1ec] sm:$0xff]
    %v137 = vld [vmem:[%s1 + $0x1f4] sm:$0xf]
    %v138 = vld [vmem:[%s1 + $0x1f8] sm:$0xff]
    %v139 = vld [vmem:[%s1 + $0x200] sm:$0xf]
    %v140 = vld [vmem:[%s1 + $0x204] sm:$0xff]
    %v141 = vld [vmem:[%s1 + $0x20c] sm:$0xf]
    %v142 = vld [vmem:[%s1 + $0x210] sm:$0xff]
    %v143 = vld [vmem:[%s1 + $0x218] sm:$0xf]
    %v144 = vld [vmem:[%s1 + $0x21c] sm:$0xff]
    %v145 = vld [vmem:[%s1 + $0x224] sm:$0xf]
    %v146 = vld [vmem:[%s1 + $0x228] sm:$0xff]
    %v147 = vld [vmem:[%s1 + $0x230] sm:$0xf]
    %v148 = vld [vmem:[%s1 + $0x234] sm:$0xff]
    %v149 = vld [vmem:[%s1 + $0x23c] sm:$0xf]
    %v150 = vld [vmem:[%s1 + $0x240] sm:$0xff]
    %v151 = vld [vmem:[%s1 + $0x248] sm:$0xf]
    %v152 = vld [vmem:[%s1 + $0x24c] sm:$0xff]
    %v153 = vld [vmem:[%s1 + $0x254] sm:$0xf]
    %v154 = vld [vmem:[%s1 + $0x258] sm:$0xff]
    %v155 = vld [vmem:[%s1 + $0x260] sm:$0xf]
    %v156 = vld [vmem:[%s1 + $0x264] sm:$0xff]
    %v157 = vld [vmem:[%s1 + $0x26c] sm:$0xf]
    %v158 = vld [vmem:[%s1 + $0x270] sm:$0xff]
    %v159 = vld [vmem:[%s1 + $0x278] sm:$0xf]
    %v160 = vld [vmem:[%s1 + $0x27c] sm:$0xff]
    %v161 = vld [vmem:[%s1 + $0x284] sm:$0xf]
    %v162 = vld [vmem:[%s1 + $0x288] sm:$0xff]
    %v163 = vld [vmem:[%s1 + $0x290] sm:$0xf]
    %v164 = vld [vmem:[%s1 + $0x294] sm:$0xff]
    %v165 = vld [vmem:[%s1 + $0x29c] sm:$0xf]
    %v166 = vld [vmem:[%s1 + $0x2a0] sm:$0xff]
    %v167 = vld [vmem:[%s1 + $0x2a8] sm:$0xf]
    %v168 = vld [vmem:[%s1 + $0x2ac] sm:$0xff]
    %v169 = vld [vmem:[%s1 + $0x2b4] sm:$0xf]
    %v170 = vld [vmem:[%s1 + $0x2b8] sm:$0xff]
    %v171 = vld [vmem:[%s1 + $0x2c0] sm:$0xf]
    %v172 = vld [vmem:[%s1 + $0x2c4] sm:$0xff]
    %v173 = vld [vmem:[%s1 + $0x2cc] sm:$0xf]
    %v174 = vld [vmem:[%s1 + $0x2d0] sm:$0xff]
    %v175 = vld [vmem:[%s1 + $0x2d8] sm:$0xf]
    %v176 = vld [vmem:[%s1 + $0x2dc] sm:$0xff]
    %v177 = vld [vmem:[%s1 + $0x2e4] sm:$0xf]
    %v178 = vld [vmem:[%s1 + $0x2e8] sm:$0xff]
    %v179 = vld [vmem:[%s1 + $0x2f0] sm:$0xf]
    %v180 = vld [vmem:[%s1 + $0x2f4] sm:$0xff]
    %v181 = vld [vmem:[%s1 + $0x2fc] sm:$0xf]
    %v182 = vld [vmem:[%s1 + $0x300] sm:$0xff]
    %v183 = vld [vmem:[%s1 + $0x308] sm:$0xf]
    %v184 = vld [vmem:[%s1 + $0x30c] sm:$0xff]
    %v185 = vld [vmem:[%s1 + $0x314] sm:$0xf]
    %v186 = vld [vmem:[%s1 + $0x318] sm:$0xff]
    %v187 = vld [vmem:[%s1 + $0x320] sm:$0xf]
    %v188 = vld [vmem:[%s1 + $0x324] sm:$0xff]
    %v189 = vld [vmem:[%s1 + $0x32c] sm:$0xf]
    %v190 = vld [vmem:[%s1 + $0x330] sm:$0xff]
    %v191 = vld [vmem:[%s1 + $0x338] sm:$0xf]
    %v192 = vld [vmem:[%s1 + $0x33c] sm:$0xff]
    %v193 = vld [vmem:[%s1 + $0x344] sm:$0xf]
    %v194 = vld [vmem:[%s1 + $0x348] sm:$0xff]
    %v195 = vld [vmem:[%s1 + $0x350] sm:$0xf]
    %v196 = vld [vmem:[%s1 + $0x354] sm:$0xff]
    %v197 = vld [vmem:[%s1 + $0x35c] sm:$0xf]
    %v198 = vld [vmem:[%s1 + $0x360] sm:$0xff]
    %v199 = vld [vmem:[%s1 + $0x368] sm:$0xf]
    %v200 = vld [vmem:[%s1 + $0x36c] sm:$0xff]
    %v201 = vld [vmem:[%s1 + $0x374] sm:$0xf]
    %v202 = vld [vmem:[%s1 + $0x378] sm:$0xff]
    %v203 = vld [vmem:[%s1 + $0x380] sm:$0xf]
    %v204 = vld [vmem:[%s1 + $0x384] sm:$0xff]
    %v205 = vld [vmem:[%s1 + $0x38c] sm:$0xf]
    %v206 = vld [vmem:[%s1 + $0x390] sm:$0xff]
    %v207 = vld [vmem:[%s1 + $0x398] sm:$0xf]
    %v208 = vld [vmem:[%s1 + $0x39c] sm:$0xff]
    %v209 = vld [vmem:[%s1 + $0x3a4] sm:$0xf]
    %v210 = vld [vmem:[%s1 + $0x3a8] sm:$0xff]
    %v211 = vld [vmem:[%s1 + $0x3b0] sm:$0xf]
    %v212 = vld [vmem:[%s1 + $0x3b4] sm:$0xff]
    %v213 = vld [vmem:[%s1 + $0x3bc] sm:$0xf]
    %v214 = vld [vmem:[%s1 + $0x3c0] sm:$0xff]
    %v215 = vld [vmem:[%s1 + $0x3c8] sm:$0xf]
    %v216 = vld [vmem:[%s1 + $0x3cc] sm:$0xff]
    %v217 = vld [vmem:[%s1 + $0x3d4] sm:$0xf]
    %v218 = vld [vmem:[%s1 + $0x3d8] sm:$0xff]
    %v219 = vld [vmem:[%s1 + $0x3e0] sm:$0xf]
    %v220 = vld [vmem:[%s1 + $0x3e4] sm:$0xff]
    %v221 = vld [vmem:[%s1 + $0x3ec] sm:$0xf]
    %v222 = vld [vmem:[%s1 + $0x3f0] sm:$0xff]
    %v223 = vld [vmem:[%s1 + $0x3f8] sm:$0xf]
    %v224 = vld [vmem:[%s1 + $0x3fc] sm:$0xff]
    %v225 = vld [vmem:[%s1 + $0x404] sm:$0xf]
    %v226 = vld [vmem:[%s1 + $0x408] sm:$0xff]
    %v227 = vld [vmem:[%s1 + $0x410] sm:$0xf]
    %v228 = vld [vmem:[%s1 + $0x414] sm:$0xff]
    %v229 = vld [vmem:[%s1 + $0x41c] sm:$0xf]
    %v230 = vld [vmem:[%s1 + $0x420] sm:$0xff]
    %v231 = vld [vmem:[%s1 + $0x428] sm:$0xf]
    %v232 = vld [vmem:[%s1 + $0x42c] sm:$0xff]
    %v233 = vld [vmem:[%s1 + $0x434] sm:$0xf]
    %v234 = vld [vmem:[%s1 + $0x438] sm:$0xff]
    %v235 = vld [vmem:[%s1 + $0x440] sm:$0xf]
    %v236 = vld [vmem:[%s1 + $0x444] sm:$0xff]
    %v237 = vld [vmem:[%s1 + $0x44c] sm:$0xf]
    %v238 = vld [vmem:[%s1 + $0x450] sm:$0xff]
    %v239 = vld [vmem:[%s1 + $0x458] sm:$0xf]
    %v240 = vld [vmem:[%s1 + $0x45c] sm:$0xff]
    %v241 = vld [vmem:[%s1 + $0x464] sm:$0xf]
    %v242 = vld [vmem:[%s1 + $0x468] sm:$0xff]
    %v243 = vld [vmem:[%s1 + $0x470] sm:$0xf]
    %v244 = vld [vmem:[%s1 + $0x474] sm:$0xff]
    %v245 = vld [vmem:[%s1 + $0x47c] sm:$0xf]
    %v246 = vld [vmem:[%s1 + $0x480] sm:$0xff]
    %v247 = vld [vmem:[%s1 + $0x488] sm:$0xf]
    %v248 = vld [vmem:[%s1 + $0x48c] sm:$0xff]
    %v249 = vld [vmem:[%s1 + $0x494] sm:$0xf]
    %v250 = vld [vmem:[%s2] sm:$0x7]
    %v252 = vlaneseq
    %v253 = vshrl.u32 %v252, 7
    %v254 = vsub.s32 0, %v253
    %v255 = vrot.slane %v250, %v254
    %v256 = vlaneseq
    %v257 = vshrl.u32 %v256, 7
    %v258 = vsub.s32 1, %v257
    %v259 = vrot.slane %v250, %v258
    %v260 = vlaneseq
    %v261 = vshrl.u32 %v260, 7
    %v262 = vsub.s32 2, %v261
    %v263 = vrot.slane %v250, %v262
    %v463 = vunpack.c.l.b16 %v54
    %v464 = vunpack.c.h.b16 %v54
    %v465 = vunpack.c.l.b16 %v55
    %v466 = vunpack.c.l.b16 %v56
    %v467 = vunpack.c.h.b16 %v56
    %v468 = vunpack.c.l.b16 %v57
    %v469 = vunpack.c.l.b16 %v58
    %v470 = vunpack.c.h.b16 %v58
    %v471 = vunpack.c.l.b16 %v59
    %v472 = vunpack.c.l.b16 %v60
    %v473 = vunpack.c.h.b16 %v60
    %v474 = vunpack.c.l.b16 %v61
    %v475 = vunpack.c.l.b16 %v62
    %v476 = vunpack.c.h.b16 %v62
    %v477 = vunpack.c.l.b16 %v63
    %v478 = vunpack.c.l.b16 %v64
    %v479 = vunpack.c.h.b16 %v64
    %v480 = vunpack.c.l.b16 %v65
    %v481 = vunpack.c.l.b16 %v66
    %v482 = vunpack.c.h.b16 %v66
    %v483 = vunpack.c.l.b16 %v67
    %v484 = vunpack.c.l.b16 %v68
    %v485 = vunpack.c.h.b16 %v68
    %v486 = vunpack.c.l.b16 %v69
    %v487 = vunpack.c.l.b16 %v70
    %v488 = vunpack.c.h.b16 %v70
    %v489 = vunpack.c.l.b16 %v71
    %v490 = vunpack.c.l.b16 %v72
    %v491 = vunpack.c.h.b16 %v72
    %v492 = vunpack.c.l.b16 %v73
    %v493 = vunpack.c.l.b16 %v74
    %v494 = vunpack.c.h.b16 %v74
    %v495 = vunpack.c.l.b16 %v75
    %v496 = vunpack.c.l.b16 %v76
    %v497 = vunpack.c.h.b16 %v76
    %v498 = vunpack.c.l.b16 %v77
    %v499 = vunpack.c.l.b16 %v78
    %v500 = vunpack.c.h.b16 %v78
    %v501 = vunpack.c.l.b16 %v79
    %v502 = vunpack.c.l.b16 %v80
    %v503 = vunpack.c.h.b16 %v80
    %v504 = vunpack.c.l.b16 %v81
    %v505 = vunpack.c.l.b16 %v82
    %v506 = vunpack.c.h.b16 %v82
    %v507 = vunpack.c.l.b16 %v83
    %v508 = vunpack.c.l.b16 %v84
    %v509 = vunpack.c.h.b16 %v84
    %v510 = vunpack.c.l.b16 %v85
    %v511 = vunpack.c.l.b16 %v86
    %v512 = vunpack.c.h.b16 %v86
    %v513 = vunpack.c.l.b16 %v87
    %v514 = vunpack.c.l.b16 %v88
    %v515 = vunpack.c.h.b16 %v88
    %v516 = vunpack.c.l.b16 %v89
    %v517 = vunpack.c.l.b16 %v90
    %v518 = vunpack.c.h.b16 %v90
    %v519 = vunpack.c.l.b16 %v91
    %v520 = vunpack.c.l.b16 %v92
    %v521 = vunpack.c.h.b16 %v92
    %v522 = vunpack.c.l.b16 %v93
    %v523 = vunpack.c.l.b16 %v94
    %v524 = vunpack.c.h.b16 %v94
    %v525 = vunpack.c.l.b16 %v95
    %v526 = vunpack.c.l.b16 %v96
    %v527 = vunpack.c.h.b16 %v96
    %v528 = vunpack.c.l.b16 %v97
    %v529 = vunpack.c.l.b16 %v98
    %v530 = vunpack.c.h.b16 %v98
    %v531 = vunpack.c.l.b16 %v99
    %v532 = vunpack.c.l.b16 %v100
    %v533 = vunpack.c.h.b16 %v100
    %v534 = vunpack.c.l.b16 %v101
    %v535 = vunpack.c.l.b16 %v102
    %v536 = vunpack.c.h.b16 %v102
    %v537 = vunpack.c.l.b16 %v103
    %v538 = vunpack.c.l.b16 %v104
    %v539 = vunpack.c.h.b16 %v104
    %v540 = vunpack.c.l.b16 %v105
    %v541 = vunpack.c.l.b16 %v106
    %v542 = vunpack.c.h.b16 %v106
    %v543 = vunpack.c.l.b16 %v107
    %v544 = vunpack.c.l.b16 %v108
    %v545 = vunpack.c.h.b16 %v108
    %v546 = vunpack.c.l.b16 %v109
    %v547 = vunpack.c.l.b16 %v110
    %v548 = vunpack.c.h.b16 %v110
    %v549 = vunpack.c.l.b16 %v111
    %v550 = vunpack.c.l.b16 %v112
    %v551 = vunpack.c.h.b16 %v112
    %v552 = vunpack.c.l.b16 %v113
    %v553 = vunpack.c.l.b16 %v114
    %v554 = vunpack.c.h.b16 %v114
    %v555 = vunpack.c.l.b16 %v115
    %v556 = vunpack.c.l.b16 %v116
    %v557 = vunpack.c.h.b16 %v116
    %v558 = vunpack.c.l.b16 %v117
    %v559 = vunpack.c.l.b16 %v118
    %v560 = vunpack.c.h.b16 %v118
    %v561 = vunpack.c.l.b16 %v119
    %v562 = vunpack.c.l.b16 %v120
    %v563 = vunpack.c.h.b16 %v120
    %v564 = vunpack.c.l.b16 %v121
    %v565 = vunpack.c.l.b16 %v122
    %v566 = vunpack.c.h.b16 %v122
    %v567 = vunpack.c.l.b16 %v123
    %v568 = vunpack.c.l.b16 %v124
    %v569 = vunpack.c.h.b16 %v124
    %v570 = vunpack.c.l.b16 %v125
    %v571 = vunpack.c.l.b16 %v126
    %v572 = vunpack.c.h.b16 %v126
    %v573 = vunpack.c.l.b16 %v127
    %v574 = vunpack.c.l.b16 %v128
    %v575 = vunpack.c.h.b16 %v128
    %v576 = vunpack.c.l.b16 %v129
    %v577 = vunpack.c.l.b16 %v130
    %v578 = vunpack.c.h.b16 %v130
    %v579 = vunpack.c.l.b16 %v131
    %v580 = vunpack.c.l.b16 %v132
    %v581 = vunpack.c.h.b16 %v132
    %v582 = vunpack.c.l.b16 %v133
    %v583 = vunpack.c.l.b16 %v134
    %v584 = vunpack.c.h.b16 %v134
    %v585 = vunpack.c.l.b16 %v135
    %v586 = vunpack.c.l.b16 %v136
    %v587 = vunpack.c.h.b16 %v136
    %v588 = vunpack.c.l.b16 %v137
    %v589 = vunpack.c.l.b16 %v138
    %v590 = vunpack.c.h.b16 %v138
    %v591 = vunpack.c.l.b16 %v139
    %v592 = vunpack.c.l.b16 %v140
    %v593 = vunpack.c.h.b16 %v140
    %v594 = vunpack.c.l.b16 %v141
    %v595 = vunpack.c.l.b16 %v142
    %v596 = vunpack.c.h.b16 %v142
    %v597 = vunpack.c.l.b16 %v143
    %v598 = vunpack.c.l.b16 %v144
    %v599 = vunpack.c.h.b16 %v144
    %v600 = vunpack.c.l.b16 %v145
    %v601 = vunpack.c.l.b16 %v146
    %v602 = vunpack.c.h.b16 %v146
    %v603 = vunpack.c.l.b16 %v147
    %v604 = vunpack.c.l.b16 %v148
    %v605 = vunpack.c.h.b16 %v148
    %v606 = vunpack.c.l.b16 %v149
    %v607 = vunpack.c.l.b16 %v150
    %v608 = vunpack.c.h.b16 %v150
    %v609 = vunpack.c.l.b16 %v151
    %v610 = vunpack.c.l.b16 %v152
    %v611 = vunpack.c.h.b16 %v152
    %v612 = vunpack.c.l.b16 %v153
    %v613 = vunpack.c.l.b16 %v154
    %v614 = vunpack.c.h.b16 %v154
    %v615 = vunpack.c.l.b16 %v155
    %v616 = vunpack.c.l.b16 %v156
    %v617 = vunpack.c.h.b16 %v156
    %v618 = vunpack.c.l.b16 %v157
    %v619 = vunpack.c.l.b16 %v158
    %v620 = vunpack.c.h.b16 %v158
    %v621 = vunpack.c.l.b16 %v159
    %v622 = vunpack.c.l.b16 %v160
    %v623 = vunpack.c.h.b16 %v160
    %v624 = vunpack.c.l.b16 %v161
    %v625 = vunpack.c.l.b16 %v162
    %v626 = vunpack.c.h.b16 %v162
    %v627 = vunpack.c.l.b16 %v163
    %v628 = vunpack.c.l.b16 %v164
    %v629 = vunpack.c.h.b16 %v164
    %v630 = vunpack.c.l.b16 %v165
    %v631 = vunpack.c.l.b16 %v166
    %v632 = vunpack.c.h.b16 %v166
    %v633 = vunpack.c.l.b16 %v167
    %v634 = vunpack.c.l.b16 %v168
    %v635 = vunpack.c.h.b16 %v168
    %v636 = vunpack.c.l.b16 %v169
    %v637 = vunpack.c.l.b16 %v170
    %v638 = vunpack.c.h.b16 %v170
    %v639 = vunpack.c.l.b16 %v171
    %v640 = vunpack.c.l.b16 %v172
    %v641 = vunpack.c.h.b16 %v172
    %v642 = vunpack.c.l.b16 %v173
    %v643 = vunpack.c.l.b16 %v174
    %v644 = vunpack.c.h.b16 %v174
    %v645 = vunpack.c.l.b16 %v175
    %v646 = vunpack.c.l.b16 %v176
    %v647 = vunpack.c.h.b16 %v176
    %v648 = vunpack.c.l.b16 %v177
    %v649 = vunpack.c.l.b16 %v178
    %v650 = vunpack.c.h.b16 %v178
    %v651 = vunpack.c.l.b16 %v179
    %v652 = vunpack.c.l.b16 %v180
    %v653 = vunpack.c.h.b16 %v180
    %v654 = vunpack.c.l.b16 %v181
    %v655 = vunpack.c.l.b16 %v182
    %v656 = vunpack.c.h.b16 %v182
    %v657 = vunpack.c.l.b16 %v183
    %v658 = vunpack.c.l.b16 %v184
    %v659 = vunpack.c.h.b16 %v184
    %v660 = vunpack.c.l.b16 %v185
    %v661 = vunpack.c.l.b16 %v186
    %v662 = vunpack.c.h.b16 %v186
    %v663 = vunpack.c.l.b16 %v187
    %v664 = vunpack.c.l.b16 %v188
    %v665 = vunpack.c.h.b16 %v188
    %v666 = vunpack.c.l.b16 %v189
    %v667 = vunpack.c.l.b16 %v190
    %v668 = vunpack.c.h.b16 %v190
    %v669 = vunpack.c.l.b16 %v191
    %v670 = vunpack.c.l.b16 %v192
    %v671 = vunpack.c.h.b16 %v192
    %v672 = vunpack.c.l.b16 %v193
    %v673 = vunpack.c.l.b16 %v194
    %v674 = vunpack.c.h.b16 %v194
    %v675 = vunpack.c.l.b16 %v195
    %v676 = vunpack.c.l.b16 %v196
    %v677 = vunpack.c.h.b16 %v196
    %v678 = vunpack.c.l.b16 %v197
    %v679 = vunpack.c.l.b16 %v198
    %v680 = vunpack.c.h.b16 %v198
    %v681 = vunpack.c.l.b16 %v199
    %v682 = vunpack.c.l.b16 %v200
    %v683 = vunpack.c.h.b16 %v200
    %v684 = vunpack.c.l.b16 %v201
    %v685 = vunpack.c.l.b16 %v202
    %v686 = vunpack.c.h.b16 %v202
    %v687 = vunpack.c.l.b16 %v203
    %v688 = vunpack.c.l.b16 %v204
    %v689 = vunpack.c.h.b16 %v204
    %v690 = vunpack.c.l.b16 %v205
    %v691 = vunpack.c.l.b16 %v206
    %v692 = vunpack.c.h.b16 %v206
    %v693 = vunpack.c.l.b16 %v207
    %v694 = vunpack.c.l.b16 %v208
    %v695 = vunpack.c.h.b16 %v208
    %v696 = vunpack.c.l.b16 %v209
    %v697 = vunpack.c.l.b16 %v210
    %v698 = vunpack.c.h.b16 %v210
    %v699 = vunpack.c.l.b16 %v211
    %v700 = vunpack.c.l.b16 %v212
    %v701 = vunpack.c.h.b16 %v212
    %v702 = vunpack.c.l.b16 %v213
    %v703 = vunpack.c.l.b16 %v214
    %v704 = vunpack.c.h.b16 %v214
    %v705 = vunpack.c.l.b16 %v215
    %v706 = vunpack.c.l.b16 %v216
    %v707 = vunpack.c.h.b16 %v216
    %v708 = vunpack.c.l.b16 %v217
    %v709 = vunpack.c.l.b16 %v218
    %v710 = vunpack.c.h.b16 %v218
    %v711 = vunpack.c.l.b16 %v219
    %v712 = vunpack.c.l.b16 %v220
    %v713 = vunpack.c.h.b16 %v220
    %v714 = vunpack.c.l.b16 %v221
    %v715 = vunpack.c.l.b16 %v222
    %v716 = vunpack.c.h.b16 %v222
    %v717 = vunpack.c.l.b16 %v223
    %v718 = vunpack.c.l.b16 %v224
    %v719 = vunpack.c.h.b16 %v224
    %v720 = vunpack.c.l.b16 %v225
    %v721 = vunpack.c.l.b16 %v226
    %v722 = vunpack.c.h.b16 %v226
    %v723 = vunpack.c.l.b16 %v227
    %v724 = vunpack.c.l.b16 %v228
    %v725 = vunpack.c.h.b16 %v228
    %v726 = vunpack.c.l.b16 %v229
    %v727 = vunpack.c.l.b16 %v230
    %v728 = vunpack.c.h.b16 %v230
    %v729 = vunpack.c.l.b16 %v231
    %v730 = vunpack.c.l.b16 %v232
    %v731 = vunpack.c.h.b16 %v232
    %v732 = vunpack.c.l.b16 %v233
    %v733 = vunpack.c.l.b16 %v234
    %v734 = vunpack.c.h.b16 %v234
    %v735 = vunpack.c.l.b16 %v235
    %v736 = vunpack.c.l.b16 %v236
    %v737 = vunpack.c.h.b16 %v236
    %v738 = vunpack.c.l.b16 %v237
    %v739 = vunpack.c.l.b16 %v238
    %v740 = vunpack.c.h.b16 %v238
    %v741 = vunpack.c.l.b16 %v239
    %v742 = vunpack.c.l.b16 %v240
    %v743 = vunpack.c.h.b16 %v240
    %v744 = vunpack.c.l.b16 %v241
    %v745 = vunpack.c.l.b16 %v242
    %v746 = vunpack.c.h.b16 %v242
    %v747 = vunpack.c.l.b16 %v243
    %v748 = vunpack.c.l.b16 %v244
    %v749 = vunpack.c.h.b16 %v244
    %v750 = vunpack.c.l.b16 %v245
    %v751 = vunpack.c.l.b16 %v246
    %v752 = vunpack.c.h.b16 %v246
    %v753 = vunpack.c.l.b16 %v247
    %v754 = vunpack.c.l.b16 %v248
    %v755 = vunpack.c.h.b16 %v248
    %v756 = vunpack.c.l.b16 %v249
    %v757 = vpack.c.b16 %v466, %v463
    %v758 = vpack.c.b16 %v467, %v464
    %v759 = vpack.c.b16 %v468, %v465
    %v760 = vpack.c.b16 %v472, %v469
    %v761 = vpack.c.b16 %v473, %v470
    %v762 = vpack.c.b16 %v474, %v471
    %v763 = vpack.c.b16 %v478, %v475
    %v764 = vpack.c.b16 %v479, %v476
    %v765 = vpack.c.b16 %v480, %v477
    %v766 = vpack.c.b16 %v484, %v481
    %v767 = vpack.c.b16 %v485, %v482
    %v768 = vpack.c.b16 %v486, %v483
    %v769 = vpack.c.b16 %v490, %v487
    %v770 = vpack.c.b16 %v491, %v488
    %v771 = vpack.c.b16 %v492, %v489
    %v772 = vpack.c.b16 %v496, %v493
    %v773 = vpack.c.b16 %v497, %v494
    %v774 = vpack.c.b16 %v498, %v495
    %v775 = vpack.c.b16 %v502, %v499
    %v776 = vpack.c.b16 %v503, %v500
    %v777 = vpack.c.b16 %v504, %v501
    %v778 = vpack.c.b16 %v508, %v505
    %v779 = vpack.c.b16 %v509, %v506
    %v780 = vpack.c.b16 %v510, %v507
    %v781 = vpack.c.b16 %v514, %v511
    %v782 = vpack.c.b16 %v515, %v512
    %v783 = vpack.c.b16 %v516, %v513
    %v784 = vpack.c.b16 %v520, %v517
    %v785 = vpack.c.b16 %v521, %v518
    %v786 = vpack.c.b16 %v522, %v519
    %v787 = vpack.c.b16 %v526, %v523
    %v788 = vpack.c.b16 %v527, %v524
    %v789 = vpack.c.b16 %v528, %v525
    %v790 = vpack.c.b16 %v532, %v529
    %v791 = vpack.c.b16 %v533, %v530
    %v792 = vpack.c.b16 %v534, %v531
    %v793 = vpack.c.b16 %v538, %v535
    %v794 = vpack.c.b16 %v539, %v536
    %v795 = vpack.c.b16 %v540, %v537
    %v796 = vpack.c.b16 %v544, %v541
    %v797 = vpack.c.b16 %v545, %v542
    %v798 = vpack.c.b16 %v546, %v543
    %v799 = vpack.c.b16 %v550, %v547
    %v800 = vpack.c.b16 %v551, %v548
    %v801 = vpack.c.b16 %v552, %v549
    %v802 = vpack.c.b16 %v556, %v553
    %v803 = vpack.c.b16 %v557, %v554
    %v804 = vpack.c.b16 %v558, %v555
    %v805 = vpack.c.b16 %v562, %v559
    %v806 = vpack.c.b16 %v563, %v560
    %v807 = vpack.c.b16 %v564, %v561
    %v808 = vpack.c.b16 %v568, %v565
    %v809 = vpack.c.b16 %v569, %v566
    %v810 = vpack.c.b16 %v570, %v567
    %v811 = vpack.c.b16 %v574, %v571
    %v812 = vpack.c.b16 %v575, %v572
    %v813 = vpack.c.b16 %v576, %v573
    %v814 = vpack.c.b16 %v580, %v577
    %v815 = vpack.c.b16 %v581, %v578
    %v816 = vpack.c.b16 %v582, %v579
    %v817 = vpack.c.b16 %v586, %v583
    %v818 = vpack.c.b16 %v587, %v584
    %v819 = vpack.c.b16 %v588, %v585
    %v820 = vpack.c.b16 %v592, %v589
    %v821 = vpack.c.b16 %v593, %v590
    %v822 = vpack.c.b16 %v594, %v591
    %v823 = vpack.c.b16 %v598, %v595
    %v824 = vpack.c.b16 %v599, %v596
    %v825 = vpack.c.b16 %v600, %v597
    %v826 = vpack.c.b16 %v604, %v601
    %v827 = vpack.c.b16 %v605, %v602
    %v828 = vpack.c.b16 %v606, %v603
    %v829 = vpack.c.b16 %v610, %v607
    %v830 = vpack.c.b16 %v611, %v608
    %v831 = vpack.c.b16 %v612, %v609
    %v832 = vpack.c.b16 %v616, %v613
    %v833 = vpack.c.b16 %v617, %v614
    %v834 = vpack.c.b16 %v618, %v615
    %v835 = vpack.c.b16 %v622, %v619
    %v836 = vpack.c.b16 %v623, %v620
    %v837 = vpack.c.b16 %v624, %v621
    %v838 = vpack.c.b16 %v628, %v625
    %v839 = vpack.c.b16 %v629, %v626
    %v840 = vpack.c.b16 %v630, %v627
    %v841 = vpack.c.b16 %v634, %v631
    %v842 = vpack.c.b16 %v635, %v632
    %v843 = vpack.c.b16 %v636, %v633
    %v844 = vpack.c.b16 %v640, %v637
    %v845 = vpack.c.b16 %v641, %v638
    %v846 = vpack.c.b16 %v642, %v639
    %v847 = vpack.c.b16 %v646, %v643
    %v848 = vpack.c.b16 %v647, %v644
    %v849 = vpack.c.b16 %v648, %v645
    %v850 = vpack.c.b16 %v652, %v649
    %v851 = vpack.c.b16 %v653, %v650
    %v852 = vpack.c.b16 %v654, %v651
    %v853 = vpack.c.b16 %v658, %v655
    %v854 = vpack.c.b16 %v659, %v656
    %v855 = vpack.c.b16 %v660, %v657
    %v856 = vpack.c.b16 %v664, %v661
    %v857 = vpack.c.b16 %v665, %v662
    %v858 = vpack.c.b16 %v666, %v663
    %v859 = vpack.c.b16 %v670, %v667
    %v860 = vpack.c.b16 %v671, %v668
    %v861 = vpack.c.b16 %v672, %v669
    %v862 = vpack.c.b16 %v676, %v673
    %v863 = vpack.c.b16 %v677, %v674
    %v864 = vpack.c.b16 %v678, %v675
    %v865 = vpack.c.b16 %v682, %v679
    %v866 = vpack.c.b16 %v683, %v680
    %v867 = vpack.c.b16 %v684, %v681
    %v868 = vpack.c.b16 %v688, %v685
    %v869 = vpack.c.b16 %v689, %v686
    %v870 = vpack.c.b16 %v690, %v687
    %v871 = vpack.c.b16 %v694, %v691
    %v872 = vpack.c.b16 %v695, %v692
    %v873 = vpack.c.b16 %v696, %v693
    %v874 = vpack.c.b16 %v700, %v697
    %v875 = vpack.c.b16 %v701, %v698
    %v876 = vpack.c.b16 %v702, %v699
    %v877 = vpack.c.b16 %v706, %v703
    %v878 = vpack.c.b16 %v707, %v704
    %v879 = vpack.c.b16 %v708, %v705
    %v880 = vpack.c.b16 %v712, %v709
    %v881 = vpack.c.b16 %v713, %v710
    %v882 = vpack.c.b16 %v714, %v711
    %v883 = vpack.c.b16 %v718, %v715
    %v884 = vpack.c.b16 %v719, %v716
    %v885 = vpack.c.b16 %v720, %v717
    %v886 = vpack.c.b16 %v724, %v721
    %v887 = vpack.c.b16 %v725, %v722
    %v888 = vpack.c.b16 %v726, %v723
    %v889 = vpack.c.b16 %v730, %v727
    %v890 = vpack.c.b16 %v731, %v728
    %v891 = vpack.c.b16 %v732, %v729
    %v892 = vpack.c.b16 %v736, %v733
    %v893 = vpack.c.b16 %v737, %v734
    %v894 = vpack.c.b16 %v738, %v735
    %v895 = vpack.c.b16 %v742, %v739
    %v896 = vpack.c.b16 %v743, %v740
    %v897 = vpack.c.b16 %v744, %v741
    %v898 = vpack.c.b16 %v748, %v745
    %v899 = vpack.c.b16 %v749, %v746
    %v900 = vpack.c.b16 %v750, %v747
    %v901 = vpack.c.b16 %v754, %v751
    %v902 = vpack.c.b16 %v755, %v752
    %v903 = vpack.c.b16 %v756, %v753
    %vm1051 = vcmask 130048
    %v1053 = vsel %vm1051, %v53, 0
    %1055 = vmatprep.subr.bf16.mxu0 %v758
    %1056 = vmatpush1.bf16.msra.mxu0 %v757
    %1057 = vmatprep.subr.bf16.mxu0 %v761
    %1058 = vmatpush1.bf16.msra.mxu0 %v760
    %1059 = vmatprep.subr.bf16.mxu0 %v764
    %1060 = vmatpush1.bf16.msra.mxu0 %v763
    %1061 = vmatprep.subr.bf16.mxu0 %v767
    %1062 = vmatpush1.bf16.msra.mxu0 %v766
    %1063 = vmatprep.subr.bf16.mxu0 %v770
    %1064 = vmatpush1.bf16.msra.mxu0 %v769
    %1065 = vmatprep.subr.bf16.mxu0 %v773
    %1066 = vmatpush1.bf16.msra.mxu0 %v772
    %1067 = vmatprep.subr.bf16.mxu0 %v776
    %1068 = vmatpush1.bf16.msra.mxu0 %v775
    %1069 = vmatprep.subr.bf16.mxu0 %v779
    %1070 = vmatpush1.bf16.msra.mxu0 %v778
    %1071 = vmatprep.subr.bf16.mxu0 %v782
    %1072 = vmatpush1.bf16.msra.mxu0 %v781
    %1073 = vmatprep.subr.bf16.mxu0 %v785
    %1074 = vmatpush1.bf16.msra.mxu0 %v784
    %1075 = vmatprep.subr.bf16.mxu0 %v788
    %1076 = vmatpush1.bf16.msra.mxu0 %v787
    %1077 = vmatprep.subr.bf16.mxu0 %v791
    %1078 = vmatpush1.bf16.msra.mxu0 %v790
    %1079 = vmatprep.subr.bf16.mxu0 %v794
    %1080 = vmatpush1.bf16.msra.mxu0 %v793
    %1081 = vmatprep.subr.bf16.mxu0 %v797
    %1082 = vmatpush1.bf16.msra.mxu0 %v796
    %1083 = vmatprep.subr.bf16.mxu0 %v800
    %1084 = vmatpush1.bf16.msra.mxu0 %v799
    %1085 = vmatprep.subr.bf16.mxu0 %v803
    %1086 = vmatpush1.bf16.msra.mxu0 %v802
    %1087 = vmatprep.mubr.bf16.mxu0 %v48
    %1088 = vmatmul.mubr.bf16.gmra.mrb[0].mxu0 %v47
    %v1089 = vpop.f32.mrb[0].mxu0
    %v1090 = vadd.f32 %v255, %v1089
    %v1091 = vpop.f32.mrb[0].mxu0
    %v1092 = vadd.f32 %v259, %v1091
    %v1093 = vpop.f32.mrb[0].mxu0
    %v1094 = vpop.f32.mrb[0].mxu0
    %1095 = vdwg.mxu0
    %1096 = vmatprep.subr.bf16.mxu0 %v806
    %1097 = vmatpush1.bf16.msra.mxu0 %v805
    %1098 = vmatprep.subr.bf16.mxu0 %v809
    %1099 = vmatpush1.bf16.msra.mxu0 %v808
    %1100 = vmatprep.subr.bf16.mxu0 %v812
    %1101 = vmatpush1.bf16.msra.mxu0 %v811
    %1102 = vmatprep.subr.bf16.mxu0 %v815
    %1103 = vmatpush1.bf16.msra.mxu0 %v814
    %1104 = vmatprep.subr.bf16.mxu0 %v818
    %1105 = vmatpush1.bf16.msra.mxu0 %v817
    %1106 = vmatprep.subr.bf16.mxu0 %v821
    %1107 = vmatpush1.bf16.msra.mxu0 %v820
    %1108 = vmatprep.subr.bf16.mxu0 %v824
    %1109 = vmatpush1.bf16.msra.mxu0 %v823
    %1110 = vmatprep.subr.bf16.mxu0 %v827
    %1111 = vmatpush1.bf16.msra.mxu0 %v826
    %1112 = vmatprep.subr.bf16.mxu0 %v830
    %1113 = vmatpush1.bf16.msra.mxu0 %v829
    %1114 = vmatprep.subr.bf16.mxu0 %v833
    %1115 = vmatpush1.bf16.msra.mxu0 %v832
    %1116 = vmatprep.subr.bf16.mxu0 %v836
    %1117 = vmatpush1.bf16.msra.mxu0 %v835
    %1118 = vmatprep.subr.bf16.mxu0 %v839
    %1119 = vmatpush1.bf16.msra.mxu0 %v838
    %1120 = vmatprep.subr.bf16.mxu0 %v842
    %1121 = vmatpush1.bf16.msra.mxu0 %v841
    %1122 = vmatprep.subr.bf16.mxu0 %v845
    %1123 = vmatpush1.bf16.msra.mxu0 %v844
    %1124 = vmatprep.subr.bf16.mxu0 %v848
    %1125 = vmatpush1.bf16.msra.mxu0 %v847
    %1126 = vmatprep.subr.bf16.mxu0 %v851
    %1127 = vmatpush1.bf16.msra.mxu0 %v850
    %1128 = vmatprep.mubr.bf16.mxu0 %v50
    %1129 = vmatmul.mubr.bf16.gmra.mrb[0].mxu0 %v49
    %v1130 = vpop.f32.mrb[0].mxu0
    %v1131 = vadd.f32 %v1090, %v1130
    %v1132 = vpop.f32.mrb[0].mxu0
    %v1133 = vadd.f32 %v1092, %v1132
    %v1134 = vpop.f32.mrb[0].mxu0
    %v1135 = vpop.f32.mrb[0].mxu0
    %1136 = vdwg.mxu0
    %1137 = vmatprep.subr.bf16.mxu0 %v854
    %1138 = vmatpush1.bf16.msra.mxu0 %v853
    %1139 = vmatprep.subr.bf16.mxu0 %v857
    %1140 = vmatpush1.bf16.msra.mxu0 %v856
    %1141 = vmatprep.subr.bf16.mxu0 %v860
    %1142 = vmatpush1.bf16.msra.mxu0 %v859
    %1143 = vmatprep.subr.bf16.mxu0 %v863
    %1144 = vmatpush1.bf16.msra.mxu0 %v862
    %1145 = vmatprep.subr.bf16.mxu0 %v866
    %1146 = vmatpush1.bf16.msra.mxu0 %v865
    %1147 = vmatprep.subr.bf16.mxu0 %v869
    %1148 = vmatpush1.bf16.msra.mxu0 %v868
    %1149 = vmatprep.subr.bf16.mxu0 %v872
    %1150 = vmatpush1.bf16.msra.mxu0 %v871
    %1151 = vmatprep.subr.bf16.mxu0 %v875
    %1152 = vmatpush1.bf16.msra.mxu0 %v874
    %1153 = vmatprep.subr.bf16.mxu0 %v878
    %1154 = vmatpush1.bf16.msra.mxu0 %v877
    %1155 = vmatprep.subr.bf16.mxu0 %v881
    %1156 = vmatpush1.bf16.msra.mxu0 %v880
    %1157 = vmatprep.subr.bf16.mxu0 %v884
    %1158 = vmatpush1.bf16.msra.mxu0 %v883
    %1159 = vmatprep.subr.bf16.mxu0 %v887
    %1160 = vmatpush1.bf16.msra.mxu0 %v886
    %1161 = vmatprep.subr.bf16.mxu0 %v890
    %1162 = vmatpush1.bf16.msra.mxu0 %v889
    %1163 = vmatprep.subr.bf16.mxu0 %v893
    %1164 = vmatpush1.bf16.msra.mxu0 %v892
    %1165 = vmatprep.subr.bf16.mxu0 %v896
    %1166 = vmatpush1.bf16.msra.mxu0 %v895
    %1167 = vmatprep.subr.bf16.mxu0 %v899
    %1168 = vmatpush1.bf16.msra.mxu0 %v898
    %1169 = vmatprep.mubr.bf16.mxu0 %v52
    %1170 = vmatmul.mubr.bf16.gmra.mrb[0].mxu0 %v51
    %v1171 = vpop.f32.mrb[0].mxu0
    %v1172 = vadd.f32 %v1131, %v1171
    %v1173 = vpop.f32.mrb[0].mxu0
    %v1174 = vadd.f32 %v1133, %v1173
    %v1175 = vpop.f32.mrb[0].mxu0
    %v1176 = vpop.f32.mrb[0].mxu0
    %1177 = vdwg.mxu0
    %1178 = vmatprep.subr.bf16.mxu0 %v902
    %1179 = vmatpush1.bf16.msra.mxu0 %v901
    %1180 = vmatprep.subr.bf16.mxu0 0
    %1181 = vmatpush1.bf16.msra.mxu0 0
    %1182 = vmatprep.subr.bf16.mxu0 0
    %1183 = vmatpush1.bf16.msra.mxu0 0
    %1184 = vmatprep.subr.bf16.mxu0 0
    %1185 = vmatpush1.bf16.msra.mxu0 0
    %1186 = vmatprep.subr.bf16.mxu0 0
    %1187 = vmatpush1.bf16.msra.mxu0 0
    %1188 = vmatprep.subr.bf16.mxu0 0
    %1189 = vmatpush1.bf16.msra.mxu0 0
    %1190 = vmatprep.subr.bf16.mxu0 0
    %1191 = vmatpush1.bf16.msra.mxu0 0
    %1192 = vmatprep.subr.bf16.mxu0 0
    %1193 = vmatpush1.bf16.msra.mxu0 0
    %1194 = vmatprep.subr.bf16.mxu0 0
    %1195 = vmatpush1.bf16.msra.mxu0 0
    %1196 = vmatprep.subr.bf16.mxu0 0
    %1197 = vmatpush1.bf16.msra.mxu0 0
    %1198 = vmatprep.subr.bf16.mxu0 0
    %1199 = vmatpush1.bf16.msra.mxu0 0
    %1200 = vmatprep.subr.bf16.mxu0 0
    %1201 = vmatpush1.bf16.msra.mxu0 0
    %1202 = vmatprep.subr.bf16.mxu0 0
    %1203 = vmatpush1.bf16.msra.mxu0 0
    %1204 = vmatprep.subr.bf16.mxu0 0
    %1205 = vmatpush1.bf16.msra.mxu0 0
    %1206 = vmatprep.subr.bf16.mxu0 0
    %1207 = vmatpush1.bf16.msra.mxu0 0
    %1208 = vmatprep.subr.bf16.mxu0 0
    %1209 = vmatpush1.bf16.msra.mxu0 0
    %1210 = vmatprep.mubr.bf16.mxu0 0
    %1211 = vmatmul.mubr.bf16.gmra.mrb[0].mxu0 %v1053
    %v1212 = vpop.f32.mrb[0].mxu0
    %v1213 = vadd.f32 %v1172, %v1212
    %v1214 = vpop.f32.mrb[0].mxu0
    %v1215 = vadd.f32 %v1174, %v1214
    %v1216 = vpop.f32.mrb[0].mxu0
    %v1217 = vpop.f32.mrb[0].mxu0
    %1218 = vdwg.mxu0
    %1219 = vmatprep.subr.bf16.mxu0 0
    %1220 = vmatpush1.bf16.msra.mxu0 %v759
    %1221 = vmatprep.subr.bf16.mxu0 0
    %1222 = vmatpush1.bf16.msra.mxu0 %v762
    %1223 = vmatprep.subr.bf16.mxu0 0
    %1224 = vmatpush1.bf16.msra.mxu0 %v765
    %1225 = vmatprep.subr.bf16.mxu0 0
    %1226 = vmatpush1.bf16.msra.mxu0 %v768
    %1227 = vmatprep.subr.bf16.mxu0 0
    %1228 = vmatpush1.bf16.msra.mxu0 %v771
    %1229 = vmatprep.subr.bf16.mxu0 0
    %1230 = vmatpush1.bf16.msra.mxu0 %v774
    %1231 = vmatprep.subr.bf16.mxu0 0
    %1232 = vmatpush1.bf16.msra.mxu0 %v777
    %1233 = vmatprep.subr.bf16.mxu0 0
    %1234 = vmatpush1.bf16.msra.mxu0 %v780
    %1235 = vmatprep.subr.bf16.mxu0 0
    %1236 = vmatpush1.bf16.msra.mxu0 %v783
    %1237 = vmatprep.subr.bf16.mxu0 0
    %1238 = vmatpush1.bf16.msra.mxu0 %v786
    %1239 = vmatprep.subr.bf16.mxu0 0
    %1240 = vmatpush1.bf16.msra.mxu0 %v789
    %1241 = vmatprep.subr.bf16.mxu0 0
    %1242 = vmatpush1.bf16.msra.mxu0 %v792
    %1243 = vmatprep.subr.bf16.mxu0 0
    %1244 = vmatpush1.bf16.msra.mxu0 %v795
    %1245 = vmatprep.subr.bf16.mxu0 0
    %1246 = vmatpush1.bf16.msra.mxu0 %v798
    %1247 = vmatprep.subr.bf16.mxu0 0
    %1248 = vmatpush1.bf16.msra.mxu0 %v801
    %1249 = vmatprep.subr.bf16.mxu0 0
    %1250 = vmatpush1.bf16.msra.mxu0 %v804
    %1251 = vmatprep.mubr.bf16.mxu0 %v48
    %1252 = vmatmul.mubr.bf16.gmra.mrb[0].mxu0 %v47
    %v1253 = vpop.f32.mrb[0].mxu0
    %v1254 = vadd.f32 %v263, %v1253
    %v1255 = vpop.f32.mrb[0].mxu0
    %v1256 = vpop.f32.mrb[0].mxu0
    %v1257 = vpop.f32.mrb[0].mxu0
    %1258 = vdwg.mxu0
    %1259 = vmatprep.subr.bf16.mxu0 0
    %1260 = vmatpush1.bf16.msra.mxu0 %v807
    %1261 = vmatprep.subr.bf16.mxu0 0
    %1262 = vmatpush1.bf16.msra.mxu0 %v810
    %1263 = vmatprep.subr.bf16.mxu0 0
    %1264 = vmatpush1.bf16.msra.mxu0 %v813
    %1265 = vmatprep.subr.bf16.mxu0 0
    %1266 = vmatpush1.bf16.msra.mxu0 %v816
    %1267 = vmatprep.subr.bf16.mxu0 0
    %1268 = vmatpush1.bf16.msra.mxu0 %v819
    %1269 = vmatprep.subr.bf16.mxu0 0
    %1270 = vmatpush1.bf16.msra.mxu0 %v822
    %1271 = vmatprep.subr.bf16.mxu0 0
    %1272 = vmatpush1.bf16.msra.mxu0 %v825
    %1273 = vmatprep.subr.bf16.mxu0 0
    %1274 = vmatpush1.bf16.msra.mxu0 %v828
    %1275 = vmatprep.subr.bf16.mxu0 0
    %1276 = vmatpush1.bf16.msra.mxu0 %v831
    %1277 = vmatprep.subr.bf16.mxu0 0
    %1278 = vmatpush1.bf16.msra.mxu0 %v834
    %1279 = vmatprep.subr.bf16.mxu0 0
    %1280 = vmatpush1.bf16.msra.mxu0 %v837
    %1281 = vmatprep.subr.bf16.mxu0 0
    %1282 = vmatpush1.bf16.msra.mxu0 %v840
    %1283 = vmatprep.subr.bf16.mxu0 0
    %1284 = vmatpush1.bf16.msra.mxu0 %v843
    %1285 = vmatprep.subr.bf16.mxu0 0
    %1286 = vmatpush1.bf16.msra.mxu0 %v846
    %1287 = vmatprep.subr.bf16.mxu0 0
    %1288 = vmatpush1.bf16.msra.mxu0 %v849
    %1289 = vmatprep.subr.bf16.mxu0 0
    %1290 = vmatpush1.bf16.msra.mxu0 %v852
    %1291 = vmatprep.mubr.bf16.mxu0 %v50
    %1292 = vmatmul.mubr.bf16.gmra.mrb[0].mxu0 %v49
    %v1293 = vpop.f32.mrb[0].mxu0
    %v1294 = vadd.f32 %v1254, %v1293
    %v1295 = vpop.f32.mrb[0].mxu0
    %v1296 = vpop.f32.mrb[0].mxu0
    %v1297 = vpop.f32.mrb[0].mxu0
    %1298 = vdwg.mxu0
    %1299 = vmatprep.subr.bf16.mxu0 0
    %1300 = vmatpush1.bf16.msra.mxu0 %v855
    %1301 = vmatprep.subr.bf16.mxu0 0
    %1302 = vmatpush1.bf16.msra.mxu0 %v858
    %1303 = vmatprep.subr.bf16.mxu0 0
    %1304 = vmatpush1.bf16.msra.mxu0 %v861
    %1305 = vmatprep.subr.bf16.mxu0 0
    %1306 = vmatpush1.bf16.msra.mxu0 %v864
    %1307 = vmatprep.subr.bf16.mxu0 0
    %1308 = vmatpush1.bf16.msra.mxu0 %v867
    %1309 = vmatprep.subr.bf16.mxu0 0
    %1310 = vmatpush1.bf16.msra.mxu0 %v870
    %1311 = vmatprep.subr.bf16.mxu0 0
    %1312 = vmatpush1.bf16.msra.mxu0 %v873
    %1313 = vmatprep.subr.bf16.mxu0 0
    %1314 = vmatpush1.bf16.msra.mxu0 %v876
    %1315 = vmatprep.subr.bf16.mxu0 0
    %1316 = vmatpush1.bf16.msra.mxu0 %v879
    %1317 = vmatprep.subr.bf16.mxu0 0
    %1318 = vmatpush1.bf16.msra.mxu0 %v882
    %1319 = vmatprep.subr.bf16.mxu0 0
    %1320 = vmatpush1.bf16.msra.mxu0 %v885
    %1321 = vmatprep.subr.bf16.mxu0 0
    %1322 = vmatpush1.bf16.msra.mxu0 %v888
    %1323 = vmatprep.subr.bf16.mxu0 0
    %1324 = vmatpush1.bf16.msra.mxu0 %v891
    %1325 = vmatprep.subr.bf16.mxu0 0
    %1326 = vmatpush1.bf16.msra.mxu0 %v894
    %1327 = vmatprep.subr.bf16.mxu0 0
    %1328 = vmatpush1.bf16.msra.mxu0 %v897
    %1329 = vmatprep.subr.bf16.mxu0 0
    %1330 = vmatpush1.bf16.msra.mxu0 %v900
    %1331 = vmatprep.mubr.bf16.mxu0 %v52
    %1332 = vmatmul.mubr.bf16.gmra.mrb[0].mxu0 %v51
    %v1333 = vpop.f32.mrb[0].mxu0
    %v1334 = vadd.f32 %v1294, %v1333
    %v1335 = vpop.f32.mrb[0].mxu0
    %v1336 = vpop.f32.mrb[0].mxu0
    %v1337 = vpop.f32.mrb[0].mxu0
    %1338 = vdwg.mxu0
    %1339 = vmatprep.subr.bf16.mxu0 0
    %1340 = vmatpush1.bf16.msra.mxu0 %v903
    %1341 = vmatprep.subr.bf16.mxu0 0
    %1342 = vmatpush1.bf16.msra.mxu0 0
    %1343 = vmatprep.subr.bf16.mxu0 0
    %1344 = vmatpush1.bf16.msra.mxu0 0
    %1345 = vmatprep.subr.bf16.mxu0 0
    %1346 = vmatpush1.bf16.msra.mxu0 0
    %1347 = vmatprep.subr.bf16.mxu0 0
    %1348 = vmatpush1.bf16.msra.mxu0 0
    %1349 = vmatprep.subr.bf16.mxu0 0
    %1350 = vmatpush1.bf16.msra.mxu0 0
    %1351 = vmatprep.subr.bf16.mxu0 0
    %1352 = vmatpush1.bf16.msra.mxu0 0
    %1353 = vmatprep.subr.bf16.mxu0 0
    %1354 = vmatpush1.bf16.msra.mxu0 0
    %1355 = vmatprep.subr.bf16.mxu0 0
    %1356 = vmatpush1.bf16.msra.mxu0 0
    %1357 = vmatprep.subr.bf16.mxu0 0
    %1358 = vmatpush1.bf16.msra.mxu0 0
    %1359 = vmatprep.subr.bf16.mxu0 0
    %1360 = vmatpush1.bf16.msra.mxu0 0
    %1361 = vmatprep.subr.bf16.mxu0 0
    %1362 = vmatpush1.bf16.msra.mxu0 0
    %1363 = vmatprep.subr.bf16.mxu0 0
    %1364 = vmatpush1.bf16.msra.mxu0 0
    %1365 = vmatprep.subr.bf16.mxu0 0
    %1366 = vmatpush1.bf16.msra.mxu0 0
    %1367 = vmatprep.subr.bf16.mxu0 0
    %1368 = vmatpush1.bf16.msra.mxu0 0
    %1369 = vmatprep.subr.bf16.mxu0 0
    %1370 = vmatpush1.bf16.msra.mxu0 0
    %1371 = vmatprep.mubr.bf16.mxu0 0
    %1372 = vmatmul.mubr.bf16.gmra.mrb[0].mxu0 %v1053
    %v1373 = vpop.f32.mrb[0].mxu0
    %v1374 = vadd.f32 %v1334, %v1373
    %v1375 = vpop.f32.mrb[0].mxu0
    %v1376 = vpop.f32.mrb[0].mxu0
    %v1377 = vpop.f32.mrb[0].mxu0
    %1378 = vdwg.mxu0
    %v1379 = vld [vmem:[%s3] sm:$0x7]
    %v1381 = vlaneseq
    %v1382 = vshrl.u32 %v1381, 7
    %v1383 = vsub.s32 0, %v1382
    %v1384 = vrot.slane %v1379, %v1383
    %v1385 = vlaneseq
    %v1386 = vshrl.u32 %v1385, 7
    %v1387 = vsub.s32 1, %v1386
    %v1388 = vrot.slane %v1379, %v1387
    %v1389 = vlaneseq
    %v1390 = vshrl.u32 %v1389, 7
    %v1391 = vsub.s32 2, %v1390
    %v1392 = vrot.slane %v1379, %v1391
    %v1396 = vmul.f32 %v1213, %v1384
    %v1397 = vmul.f32 %v1215, %v1388
    %v1398 = vmul.f32 %v1374, %v1392
    %v1399 = vld [vmem:[%s4] sm:$0x7]
    %v1401 = vlaneseq
    %v1402 = vshrl.u32 %v1401, 7
    %v1403 = vsub.s32 0, %v1402
    %v1404 = vrot.slane %v1399, %v1403
    %v1405 = vlaneseq
    %v1406 = vshrl.u32 %v1405, 7
    %v1407 = vsub.s32 1, %v1406
    %v1408 = vrot.slane %v1399, %v1407
    %v1409 = vlaneseq
    %v1410 = vshrl.u32 %v1409, 7
    %v1411 = vsub.s32 2, %v1410
    %v1412 = vrot.slane %v1399, %v1411
    %v1416 = vadd.f32 %v1396, %v1404
    %v1417 = vadd.f32 %v1397, %v1408
    %v1418 = vadd.f32 %v1398, %v1412
    %v1419 = vmax.f32 %v1416, 0.0
    %v1420 = vmax.f32 %v1417, 0.0
    %v1421 = vmax.f32 %v1418, 0.0
    %v1422 = vpack.c.bf16 %v1419, %v1419
    %v1423 = vpack.c.bf16 %v1420, %v1420
    %v1424 = vpack.c.bf16 %v1421, %v1421
    %v1425 = vld [vmem:[%s5] sm:$0xff]
    %v1426 = vld [vmem:[%s5 + $0x8] sm:$0xf]
    %v1427 = vld [vmem:[%s5 + $0xc] sm:$0xff]
    %v1428 = vld [vmem:[%s5 + $0x14] sm:$0xf]
    %v1429 = vld [vmem:[%s5 + $0x18] sm:$0xff]
    %v1430 = vld [vmem:[%s5 + $0x20] sm:$0xf]
    %v1431 = vld [vmem:[%s5 + $0x24] sm:$0xff]
    %v1432 = vld [vmem:[%s5 + $0x2c] sm:$0xf]
    %v1433 = vld [vmem:[%s5 + $0x30] sm:$0xff]
    %v1434 = vld [vmem:[%s5 + $0x38] sm:$0xf]
    %v1435 = vld [vmem:[%s5 + $0x3c] sm:$0xff]
    %v1436 = vld [vmem:[%s5 + $0x44] sm:$0xf]
    %v1437 = vld [vmem:[%s5 + $0x48] sm:$0xff]
    %v1438 = vld [vmem:[%s5 + $0x50] sm:$0xf]
    %v1439 = vld [vmem:[%s5 + $0x54] sm:$0xff]
    %v1440 = vld [vmem:[%s5 + $0x5c] sm:$0xf]
    %v1441 = vld [vmem:[%s5 + $0x60] sm:$0xff]
    %v1442 = vld [vmem:[%s5 + $0x68] sm:$0xf]
    %v1443 = vld [vmem:[%s5 + $0x6c] sm:$0xff]
    %v1444 = vld [vmem:[%s5 + $0x74] sm:$0xf]
    %v1445 = vld [vmem:[%s5 + $0x78] sm:$0xff]
    %v1446 = vld [vmem:[%s5 + $0x80] sm:$0xf]
    %v1447 = vld [vmem:[%s5 + $0x84] sm:$0xff]
    %v1448 = vld [vmem:[%s5 + $0x8c] sm:$0xf]
    %v1449 = vld [vmem:[%s5 + $0x90] sm:$0xff]
    %v1450 = vld [vmem:[%s5 + $0x98] sm:$0xf]
    %v1451 = vld [vmem:[%s5 + $0x9c] sm:$0xff]
    %v1452 = vld [vmem:[%s5 + $0xa4] sm:$0xf]
    %v1453 = vld [vmem:[%s5 + $0xa8] sm:$0xff]
    %v1454 = vld [vmem:[%s5 + $0xb0] sm:$0xf]
    %v1455 = vld [vmem:[%s5 + $0xb4] sm:$0xff]
    %v1456 = vld [vmem:[%s5 + $0xbc] sm:$0xf]
    %v1457 = vld [vmem:[%s5 + $0xc0] sm:$0xff]
    %v1458 = vld [vmem:[%s5 + $0xc8] sm:$0xf]
    %v1459 = vld [vmem:[%s5 + $0xcc] sm:$0xff]
    %v1460 = vld [vmem:[%s5 + $0xd4] sm:$0xf]
    %v1461 = vld [vmem:[%s5 + $0xd8] sm:$0xff]
    %v1462 = vld [vmem:[%s5 + $0xe0] sm:$0xf]
    %v1463 = vld [vmem:[%s5 + $0xe4] sm:$0xff]
    %v1464 = vld [vmem:[%s5 + $0xec] sm:$0xf]
    %v1465 = vld [vmem:[%s5 + $0xf0] sm:$0xff]
    %v1466 = vld [vmem:[%s5 + $0xf8] sm:$0xf]
    %v1467 = vld [vmem:[%s5 + $0xfc] sm:$0xff]
    %v1468 = vld [vmem:[%s5 + $0x104] sm:$0xf]
    %v1469 = vld [vmem:[%s5 + $0x108] sm:$0xff]
    %v1470 = vld [vmem:[%s5 + $0x110] sm:$0xf]
    %v1471 = vld [vmem:[%s5 + $0x114] sm:$0xff]
    %v1472 = vld [vmem:[%s5 + $0x11c] sm:$0xf]
    %v1473 = vld [vmem:[%s5 + $0x120] sm:$0xff]
    %v1474 = vld [vmem:[%s5 + $0x128] sm:$0xf]
    %v1475 = vld [vmem:[%s5 + $0x12c] sm:$0xff]
    %v1476 = vld [vmem:[%s5 + $0x134] sm:$0xf]
    %v1477 = vld [vmem:[%s5 + $0x138] sm:$0xff]
    %v1478 = vld [vmem:[%s5 + $0x140] sm:$0xf]
    %v1479 = vld [vmem:[%s5 + $0x144] sm:$0xff]
    %v1480 = vld [vmem:[%s5 + $0x14c] sm:$0xf]
    %v1481 = vld [vmem:[%s5 + $0x150] sm:$0xff]
    %v1482 = vld [vmem:[%s5 + $0x158] sm:$0xf]
    %v1483 = vld [vmem:[%s5 + $0x15c] sm:$0xff]
    %v1484 = vld [vmem:[%s5 + $0x164] sm:$0xf]
    %v1485 = vld [vmem:[%s5 + $0x168] sm:$0xff]
    %v1486 = vld [vmem:[%s5 + $0x170] sm:$0xf]
    %v1487 = vld [vmem:[%s5 + $0x174] sm:$0xff]
    %v1488 = vld [vmem:[%s5 + $0x17c] sm:$0xf]
    %v1489 = vld [vmem:[%s5 + $0x180] sm:$0xff]
    %v1490 = vld [vmem:[%s5 + $0x188] sm:$0xf]
    %v1491 = vld [vmem:[%s5 + $0x18c] sm:$0xff]
    %v1492 = vld [vmem:[%s5 + $0x194] sm:$0xf]
    %v1493 = vld [vmem:[%s5 + $0x198] sm:$0xff]
    %v1494 = vld [vmem:[%s5 + $0x1a0] sm:$0xf]
    %v1495 = vld [vmem:[%s5 + $0x1a4] sm:$0xff]
    %v1496 = vld [vmem:[%s5 + $0x1ac] sm:$0xf]
    %v1497 = vld [vmem:[%s5 + $0x1b0] sm:$0xff]
    %v1498 = vld [vmem:[%s5 + $0x1b8] sm:$0xf]
    %v1499 = vld [vmem:[%s5 + $0x1bc] sm:$0x33]
    %v1500 = vld [vmem:[%s5 + $0x1c4] sm:$0x3]
    %v1501 = vld [vmem:[%s6] sm:$0x7]
    %v1503 = vlaneseq
    %v1504 = vshrl.u32 %v1503, 7
    %v1505 = vsub.s32 0, %v1504
    %v1506 = vrot.slane %v1501, %v1505
    %v1507 = vlaneseq
    %v1508 = vshrl.u32 %v1507, 7
    %v1509 = vsub.s32 1, %v1508
    %v1510 = vrot.slane %v1501, %v1509
    %v1511 = vlaneseq
    %v1512 = vshrl.u32 %v1511, 7
    %v1513 = vsub.s32 2, %v1512
    %v1514 = vrot.slane %v1501, %v1513
    %v1594 = vunpack.c.l.b16 %v1425
    %v1595 = vunpack.c.h.b16 %v1425
    %v1596 = vunpack.c.l.b16 %v1426
    %v1597 = vunpack.c.l.b16 %v1427
    %v1598 = vunpack.c.h.b16 %v1427
    %v1599 = vunpack.c.l.b16 %v1428
    %v1600 = vunpack.c.l.b16 %v1429
    %v1601 = vunpack.c.h.b16 %v1429
    %v1602 = vunpack.c.l.b16 %v1430
    %v1603 = vunpack.c.l.b16 %v1431
    %v1604 = vunpack.c.h.b16 %v1431
    %v1605 = vunpack.c.l.b16 %v1432
    %v1606 = vunpack.c.l.b16 %v1433
    %v1607 = vunpack.c.h.b16 %v1433
    %v1608 = vunpack.c.l.b16 %v1434
    %v1609 = vunpack.c.l.b16 %v1435
    %v1610 = vunpack.c.h.b16 %v1435
    %v1611 = vunpack.c.l.b16 %v1436
    %v1612 = vunpack.c.l.b16 %v1437
    %v1613 = vunpack.c.h.b16 %v1437
    %v1614 = vunpack.c.l.b16 %v1438
    %v1615 = vunpack.c.l.b16 %v1439
    %v1616 = vunpack.c.h.b16 %v1439
    %v1617 = vunpack.c.l.b16 %v1440
    %v1618 = vunpack.c.l.b16 %v1441
    %v1619 = vunpack.c.h.b16 %v1441
    %v1620 = vunpack.c.l.b16 %v1442
    %v1621 = vunpack.c.l.b16 %v1443
    %v1622 = vunpack.c.h.b16 %v1443
    %v1623 = vunpack.c.l.b16 %v1444
    %v1624 = vunpack.c.l.b16 %v1445
    %v1625 = vunpack.c.h.b16 %v1445
    %v1626 = vunpack.c.l.b16 %v1446
    %v1627 = vunpack.c.l.b16 %v1447
    %v1628 = vunpack.c.h.b16 %v1447
    %v1629 = vunpack.c.l.b16 %v1448
    %v1630 = vunpack.c.l.b16 %v1449
    %v1631 = vunpack.c.h.b16 %v1449
    %v1632 = vunpack.c.l.b16 %v1450
    %v1633 = vunpack.c.l.b16 %v1451
    %v1634 = vunpack.c.h.b16 %v1451
    %v1635 = vunpack.c.l.b16 %v1452
    %v1636 = vunpack.c.l.b16 %v1453
    %v1637 = vunpack.c.h.b16 %v1453
    %v1638 = vunpack.c.l.b16 %v1454
    %v1639 = vunpack.c.l.b16 %v1455
    %v1640 = vunpack.c.h.b16 %v1455
    %v1641 = vunpack.c.l.b16 %v1456
    %v1642 = vunpack.c.l.b16 %v1457
    %v1643 = vunpack.c.h.b16 %v1457
    %v1644 = vunpack.c.l.b16 %v1458
    %v1645 = vunpack.c.l.b16 %v1459
    %v1646 = vunpack.c.h.b16 %v1459
    %v1647 = vunpack.c.l.b16 %v1460
    %v1648 = vunpack.c.l.b16 %v1461
    %v1649 = vunpack.c.h.b16 %v1461
    %v1650 = vunpack.c.l.b16 %v1462
    %v1651 = vunpack.c.l.b16 %v1463
    %v1652 = vunpack.c.h.b16 %v1463
    %v1653 = vunpack.c.l.b16 %v1464
    %v1654 = vunpack.c.l.b16 %v1465
    %v1655 = vunpack.c.h.b16 %v1465
    %v1656 = vunpack.c.l.b16 %v1466
    %v1657 = vunpack.c.l.b16 %v1467
    %v1658 = vunpack.c.h.b16 %v1467
    %v1659 = vunpack.c.l.b16 %v1468
    %v1660 = vunpack.c.l.b16 %v1469
    %v1661 = vunpack.c.h.b16 %v1469
    %v1662 = vunpack.c.l.b16 %v1470
    %v1663 = vunpack.c.l.b16 %v1471
    %v1664 = vunpack.c.h.b16 %v1471
    %v1665 = vunpack.c.l.b16 %v1472
    %v1666 = vunpack.c.l.b16 %v1473
    %v1667 = vunpack.c.h.b16 %v1473
    %v1668 = vunpack.c.l.b16 %v1474
    %v1669 = vunpack.c.l.b16 %v1475
    %v1670 = vunpack.c.h.b16 %v1475
    %v1671 = vunpack.c.l.b16 %v1476
    %v1672 = vunpack.c.l.b16 %v1477
    %v1673 = vunpack.c.h.b16 %v1477
    %v1674 = vunpack.c.l.b16 %v1478
    %v1675 = vunpack.c.l.b16 %v1479
    %v1676 = vunpack.c.h.b16 %v1479
    %v1677 = vunpack.c.l.b16 %v1480
    %v1678 = vunpack.c.l.b16 %v1481
    %v1679 = vunpack.c.h.b16 %v1481
    %v1680 = vunpack.c.l.b16 %v1482
    %v1681 = vunpack.c.l.b16 %v1483
    %v1682 = vunpack.c.h.b16 %v1483
    %v1683 = vunpack.c.l.b16 %v1484
    %v1684 = vunpack.c.l.b16 %v1485
    %v1685 = vunpack.c.h.b16 %v1485
    %v1686 = vunpack.c.l.b16 %v1486
    %v1687 = vunpack.c.l.b16 %v1487
    %v1688 = vunpack.c.h.b16 %v1487
    %v1689 = vunpack.c.l.b16 %v1488
    %v1690 = vunpack.c.l.b16 %v1489
    %v1691 = vunpack.c.h.b16 %v1489
    %v1692 = vunpack.c.l.b16 %v1490
    %v1693 = vunpack.c.l.b16 %v1491
    %v1694 = vunpack.c.h.b16 %v1491
    %v1695 = vunpack.c.l.b16 %v1492
    %v1696 = vunpack.c.l.b16 %v1493
    %v1697 = vunpack.c.h.b16 %v1493
    %v1698 = vunpack.c.l.b16 %v1494
    %v1699 = vunpack.c.l.b16 %v1495
    %v1700 = vunpack.c.h.b16 %v1495
    %v1701 = vunpack.c.l.b16 %v1496
    %v1702 = vunpack.c.l.b16 %v1497
    %v1703 = vunpack.c.h.b16 %v1497
    %v1704 = vunpack.c.l.b16 %v1498
    %v1705 = vunpack.c.l.b16 %v1499
    %v1706 = vunpack.c.h.b16 %v1499
    %v1707 = vunpack.c.l.b16 %v1500
    %v1708 = vpack.c.b16 %v1597, %v1594
    %v1709 = vpack.c.b16 %v1598, %v1595
    %v1710 = vpack.c.b16 %v1599, %v1596
    %v1711 = vpack.c.b16 %v1603, %v1600
    %v1712 = vpack.c.b16 %v1604, %v1601
    %v1713 = vpack.c.b16 %v1605, %v1602
    %v1714 = vpack.c.b16 %v1609, %v1606
    %v1715 = vpack.c.b16 %v1610, %v1607
    %v1716 = vpack.c.b16 %v1611, %v1608
    %v1717 = vpack.c.b16 %v1615, %v1612
    %v1718 = vpack.c.b16 %v1616, %v1613
    %v1719 = vpack.c.b16 %v1617, %v1614
    %v1720 = vpack.c.b16 %v1621, %v1618
    %v1721 = vpack.c.b16 %v1622, %v1619
    %v1722 = vpack.c.b16 %v1623, %v1620
    %v1723 = vpack.c.b16 %v1627, %v1624
    %v1724 = vpack.c.b16 %v1628, %v1625
    %v1725 = vpack.c.b16 %v1629, %v1626
    %v1726 = vpack.c.b16 %v1633, %v1630
    %v1727 = vpack.c.b16 %v1634, %v1631
    %v1728 = vpack.c.b16 %v1635, %v1632
    %v1729 = vpack.c.b16 %v1639, %v1636
    %v1730 = vpack.c.b16 %v1640, %v1637
    %v1731 = vpack.c.b16 %v1641, %v1638
    %v1732 = vpack.c.b16 %v1645, %v1642
    %v1733 = vpack.c.b16 %v1646, %v1643
    %v1734 = vpack.c.b16 %v1647, %v1644
    %v1735 = vpack.c.b16 %v1651, %v1648
    %v1736 = vpack.c.b16 %v1652, %v1649
    %v1737 = vpack.c.b16 %v1653, %v1650
    %v1738 = vpack.c.b16 %v1657, %v1654
    %v1739 = vpack.c.b16 %v1658, %v1655
    %v1740 = vpack.c.b16 %v1659, %v1656
    %v1741 = vpack.c.b16 %v1663, %v1660
    %v1742 = vpack.c.b16 %v1664, %v1661
    %v1743 = vpack.c.b16 %v1665, %v1662
    %v1744 = vpack.c.b16 %v1669, %v1666
    %v1745 = vpack.c.b16 %v1670, %v1667
    %v1746 = vpack.c.b16 %v1671, %v1668
    %v1747 = vpack.c.b16 %v1675, %v1672
    %v1748 = vpack.c.b16 %v1676, %v1673
    %v1749 = vpack.c.b16 %v1677, %v1674
    %v1750 = vpack.c.b16 %v1681, %v1678
    %v1751 = vpack.c.b16 %v1682, %v1679
    %v1752 = vpack.c.b16 %v1683, %v1680
    %v1753 = vpack.c.b16 %v1687, %v1684
    %v1754 = vpack.c.b16 %v1688, %v1685
    %v1755 = vpack.c.b16 %v1689, %v1686
    %v1756 = vpack.c.b16 %v1693, %v1690
    %v1757 = vpack.c.b16 %v1694, %v1691
    %v1758 = vpack.c.b16 %v1695, %v1692
    %v1759 = vpack.c.b16 %v1699, %v1696
    %v1760 = vpack.c.b16 %v1700, %v1697
    %v1761 = vpack.c.b16 %v1701, %v1698
    %v1762 = vpack.c.b16 %v1705, %v1702
    %v1763 = vpack.c.b16 %v1706, %v1703
    %v1764 = vpack.c.b16 %v1707, %v1704
    %vm1819 = vcmask 359424
    %v1821 = vsel %vm1819, %v1424, 0
    %vm1823 = vcmask 1045504
    %v1825 = vsel %vm1823, %v1762, 0
    %v1828 = vsel %vm1823, %v1763, 0
    %v1831 = vsel %vm1823, %v1764, 0
    %1833 = vmatprep.subr.bf16.mxu0 %v1709
    %1834 = vmatpush1.bf16.msra.mxu0 %v1708
    %1835 = vmatprep.subr.bf16.mxu0 %v1712
    %1836 = vmatpush1.bf16.msra.mxu0 %v1711
    %1837 = vmatprep.subr.bf16.mxu0 %v1715
    %1838 = vmatpush1.bf16.msra.mxu0 %v1714
    %1839 = vmatprep.subr.bf16.mxu0 %v1718
    %1840 = vmatpush1.bf16.msra.mxu0 %v1717
    %1841 = vmatprep.subr.bf16.mxu0 %v1721
    %1842 = vmatpush1.bf16.msra.mxu0 %v1720
    %1843 = vmatprep.subr.bf16.mxu0 %v1724
    %1844 = vmatpush1.bf16.msra.mxu0 %v1723
    %1845 = vmatprep.subr.bf16.mxu0 %v1727
    %1846 = vmatpush1.bf16.msra.mxu0 %v1726
    %1847 = vmatprep.subr.bf16.mxu0 %v1730
    %1848 = vmatpush1.bf16.msra.mxu0 %v1729
    %1849 = vmatprep.subr.bf16.mxu0 %v1733
    %1850 = vmatpush1.bf16.msra.mxu0 %v1732
    %1851 = vmatprep.subr.bf16.mxu0 %v1736
    %1852 = vmatpush1.bf16.msra.mxu0 %v1735
    %1853 = vmatprep.subr.bf16.mxu0 %v1739
    %1854 = vmatpush1.bf16.msra.mxu0 %v1738
    %1855 = vmatprep.subr.bf16.mxu0 %v1742
    %1856 = vmatpush1.bf16.msra.mxu0 %v1741
    %1857 = vmatprep.subr.bf16.mxu0 %v1745
    %1858 = vmatpush1.bf16.msra.mxu0 %v1744
    %1859 = vmatprep.subr.bf16.mxu0 %v1748
    %1860 = vmatpush1.bf16.msra.mxu0 %v1747
    %1861 = vmatprep.subr.bf16.mxu0 %v1751
    %1862 = vmatpush1.bf16.msra.mxu0 %v1750
    %1863 = vmatprep.subr.bf16.mxu0 %v1754
    %1864 = vmatpush1.bf16.msra.mxu0 %v1753
    %1865 = vmatprep.mubr.bf16.mxu0 %v1423
    %1866 = vmatmul.mubr.bf16.gmra.mrb[0].mxu0 %v1422
    %v1867 = vpop.f32.mrb[0].mxu0
    %v1868 = vadd.f32 %v1506, %v1867
    %v1869 = vpop.f32.mrb[0].mxu0
    %v1870 = vadd.f32 %v1510, %v1869
    %v1871 = vpop.f32.mrb[0].mxu0
    %v1872 = vpop.f32.mrb[0].mxu0
    %1873 = vdwg.mxu0
    %1874 = vmatprep.subr.bf16.mxu0 %v1757
    %1875 = vmatpush1.bf16.msra.mxu0 %v1756
    %1876 = vmatprep.subr.bf16.mxu0 %v1760
    %1877 = vmatpush1.bf16.msra.mxu0 %v1759
    %1878 = vmatprep.subr.bf16.mxu0 %v1828
    %1879 = vmatpush1.bf16.msra.mxu0 %v1825
    %1880 = vmatprep.subr.bf16.mxu0 0
    %1881 = vmatpush1.bf16.msra.mxu0 0
    %1882 = vmatprep.subr.bf16.mxu0 0
    %1883 = vmatpush1.bf16.msra.mxu0 0
    %1884 = vmatprep.subr.bf16.mxu0 0
    %1885 = vmatpush1.bf16.msra.mxu0 0
    %1886 = vmatprep.subr.bf16.mxu0 0
    %1887 = vmatpush1.bf16.msra.mxu0 0
    %1888 = vmatprep.subr.bf16.mxu0 0
    %1889 = vmatpush1.bf16.msra.mxu0 0
    %1890 = vmatprep.subr.bf16.mxu0 0
    %1891 = vmatpush1.bf16.msra.mxu0 0
    %1892 = vmatprep.subr.bf16.mxu0 0
    %1893 = vmatpush1.bf16.msra.mxu0 0
    %1894 = vmatprep.subr.bf16.mxu0 0
    %1895 = vmatpush1.bf16.msra.mxu0 0
    %1896 = vmatprep.subr.bf16.mxu0 0
    %1897 = vmatpush1.bf16.msra.mxu0 0
    %1898 = vmatprep.subr.bf16.mxu0 0
    %1899 = vmatpush1.bf16.msra.mxu0 0
    %1900 = vmatprep.subr.bf16.mxu0 0
    %1901 = vmatpush1.bf16.msra.mxu0 0
    %1902 = vmatprep.subr.bf16.mxu0 0
    %1903 = vmatpush1.bf16.msra.mxu0 0
    %1904 = vmatprep.subr.bf16.mxu0 0
    %1905 = vmatpush1.bf16.msra.mxu0 0
    %1906 = vmatprep.mubr.bf16.mxu0 0
    %1907 = vmatmul.mubr.bf16.gmra.mrb[0].mxu0 %v1821
    %v1908 = vpop.f32.mrb[0].mxu0
    %v1909 = vadd.f32 %v1868, %v1908
    %v1910 = vpop.f32.mrb[0].mxu0
    %v1911 = vadd.f32 %v1870, %v1910
    %v1912 = vpop.f32.mrb[0].mxu0
    %v1913 = vpop.f32.mrb[0].mxu0
    %1914 = vdwg.mxu0
    %1915 = vmatprep.subr.bf16.mxu0 0
    %1916 = vmatpush1.bf16.msra.mxu0 %v1710
    %1917 = vmatprep.subr.bf16.mxu0 0
    %1918 = vmatpush1.bf16.msra.mxu0 %v1713
    %1919 = vmatprep.subr.bf16.mxu0 0
    %1920 = vmatpush1.bf16.msra.mxu0 %v1716
    %1921 = vmatprep.subr.bf16.mxu0 0
    %1922 = vmatpush1.bf16.msra.mxu0 %v1719
    %1923 = vmatprep.subr.bf16.mxu0 0
    %1924 = vmatpush1.bf16.msra.mxu0 %v1722
    %1925 = vmatprep.subr.bf16.mxu0 0
    %1926 = vmatpush1.bf16.msra.mxu0 %v1725
    %1927 = vmatprep.subr.bf16.mxu0 0
    %1928 = vmatpush1.bf16.msra.mxu0 %v1728
    %1929 = vmatprep.subr.bf16.mxu0 0
    %1930 = vmatpush1.bf16.msra.mxu0 %v1731
    %1931 = vmatprep.subr.bf16.mxu0 0
    %1932 = vmatpush1.bf16.msra.mxu0 %v1734
    %1933 = vmatprep.subr.bf16.mxu0 0
    %1934 = vmatpush1.bf16.msra.mxu0 %v1737
    %1935 = vmatprep.subr.bf16.mxu0 0
    %1936 = vmatpush1.bf16.msra.mxu0 %v1740
    %1937 = vmatprep.subr.bf16.mxu0 0
    %1938 = vmatpush1.bf16.msra.mxu0 %v1743
    %1939 = vmatprep.subr.bf16.mxu0 0
    %1940 = vmatpush1.bf16.msra.mxu0 %v1746
    %1941 = vmatprep.subr.bf16.mxu0 0
    %1942 = vmatpush1.bf16.msra.mxu0 %v1749
    %1943 = vmatprep.subr.bf16.mxu0 0
    %1944 = vmatpush1.bf16.msra.mxu0 %v1752
    %1945 = vmatprep.subr.bf16.mxu0 0
    %1946 = vmatpush1.bf16.msra.mxu0 %v1755
    %1947 = vmatprep.mubr.bf16.mxu0 %v1423
    %1948 = vmatmul.mubr.bf16.gmra.mrb[0].mxu0 %v1422
    %v1949 = vpop.f32.mrb[0].mxu0
    %v1950 = vadd.f32 %v1514, %v1949
    %v1951 = vpop.f32.mrb[0].mxu0
    %v1952 = vpop.f32.mrb[0].mxu0
    %v1953 = vpop.f32.mrb[0].mxu0
    %1954 = vdwg.mxu0
    %1955 = vmatprep.subr.bf16.mxu0 0
    %1956 = vmatpush1.bf16.msra.mxu0 %v1758
    %1957 = vmatprep.subr.bf16.mxu0 0
    %1958 = vmatpush1.bf16.msra.mxu0 %v1761
    %1959 = vmatprep.subr.bf16.mxu0 0
    %1960 = vmatpush1.bf16.msra.mxu0 %v1831
    %1961 = vmatprep.subr.bf16.mxu0 0
    %1962 = vmatpush1.bf16.msra.mxu0 0
    %1963 = vmatprep.subr.bf16.mxu0 0
    %1964 = vmatpush1.bf16.msra.mxu0 0
    %1965 = vmatprep.subr.bf16.mxu0 0
    %1966 = vmatpush1.bf16.msra.mxu0 0
    %1967 = vmatprep.subr.bf16.mxu0 0
    %1968 = vmatpush1.bf16.msra.mxu0 0
    %1969 = vmatprep.subr.bf16.mxu0 0
    %1970 = vmatpush1.bf16.msra.mxu0 0
    %1971 = vmatprep.subr.bf16.mxu0 0
    %1972 = vmatpush1.bf16.msra.mxu0 0
    %1973 = vmatprep.subr.bf16.mxu0 0
    %1974 = vmatpush1.bf16.msra.mxu0 0
    %1975 = vmatprep.subr.bf16.mxu0 0
    %1976 = vmatpush1.bf16.msra.mxu0 0
    %1977 = vmatprep.subr.bf16.mxu0 0
    %1978 = vmatpush1.bf16.msra.mxu0 0
    %1979 = vmatprep.subr.bf16.mxu0 0
    %1980 = vmatpush1.bf16.msra.mxu0 0
    %1981 = vmatprep.subr.bf16.mxu0 0
    %1982 = vmatpush1.bf16.msra.mxu0 0
    %1983 = vmatprep.subr.bf16.mxu0 0
    %1984 = vmatpush1.bf16.msra.mxu0 0
    %1985 = vmatprep.subr.bf16.mxu0 0
    %1986 = vmatpush1.bf16.msra.mxu0 0
    %1987 = vmatprep.mubr.bf16.mxu0 0
    %1988 = vmatmul.mubr.bf16.gmra.mrb[0].mxu0 %v1821
    %v1989 = vpop.f32.mrb[0].mxu0
    %v1990 = vadd.f32 %v1950, %v1989
    %v1991 = vpop.f32.mrb[0].mxu0
    %v1992 = vpop.f32.mrb[0].mxu0
    %v1993 = vpop.f32.mrb[0].mxu0
    %1994 = vdwg.mxu0
    %v1995 = vld [vmem:[%s7] sm:$0x7]
    %v1997 = vlaneseq
    %v1998 = vshrl.u32 %v1997, 7
    %v1999 = vsub.s32 0, %v1998
    %v2000 = vrot.slane %v1995, %v1999
    %v2001 = vlaneseq
    %v2002 = vshrl.u32 %v2001, 7
    %v2003 = vsub.s32 1, %v2002
    %v2004 = vrot.slane %v1995, %v2003
    %v2005 = vlaneseq
    %v2006 = vshrl.u32 %v2005, 7
    %v2007 = vsub.s32 2, %v2006
    %v2008 = vrot.slane %v1995, %v2007
    %v2012 = vmul.f32 %v1909, %v2000
    %v2013 = vmul.f32 %v1911, %v2004
    %v2014 = vmul.f32 %v1990, %v2008
    %v2015 = vld [vmem:[%s8] sm:$0x7]
    %v2017 = vlaneseq
    %v2018 = vshrl.u32 %v2017, 7
    %v2019 = vsub.s32 0, %v2018
    %v2020 = vrot.slane %v2015, %v2019
    %v2021 = vlaneseq
    %v2022 = vshrl.u32 %v2021, 7
    %v2023 = vsub.s32 1, %v2022
    %v2024 = vrot.slane %v2015, %v2023
    %v2025 = vlaneseq
    %v2026 = vshrl.u32 %v2025, 7
    %v2027 = vsub.s32 2, %v2026
    %v2028 = vrot.slane %v2015, %v2027
    %v2032 = vadd.f32 %v2012, %v2020
    %v2033 = vadd.f32 %v2013, %v2024
    %v2034 = vadd.f32 %v2014, %v2028
    %v2035 = vmax.f32 %v2032, 0.0
    %v2036 = vmax.f32 %v2033, 0.0
    %v2037 = vmax.f32 %v2034, 0.0
    %v2038 = vpack.c.bf16 %v2035, %v2035
    %v2039 = vpack.c.bf16 %v2036, %v2036
    %v2040 = vpack.c.bf16 %v2037, %v2037
    %v2041 = vld [vmem:[%s9] sm:$0xff]
    %v2042 = vld [vmem:[%s9 + $0x8] sm:$0xff]
    %v2043 = vld [vmem:[%s9 + $0x10] sm:$0xff]
    %v2044 = vld [vmem:[%s9 + $0x18] sm:$0xf]
    %v2045 = vld [vmem:[%s9 + $0x1c] sm:$0xff]
    %v2046 = vld [vmem:[%s9 + $0x24] sm:$0xff]
    %v2047 = vld [vmem:[%s9 + $0x2c] sm:$0xff]
    %v2048 = vld [vmem:[%s9 + $0x34] sm:$0xf]
    %v2049 = vld [vmem:[%s9 + $0x38] sm:$0xff]
    %v2050 = vld [vmem:[%s9 + $0x40] sm:$0xff]
    %v2051 = vld [vmem:[%s9 + $0x48] sm:$0xff]
    %v2052 = vld [vmem:[%s9 + $0x50] sm:$0xf]
    %v2053 = vld [vmem:[%s9 + $0x54] sm:$0xff]
    %v2054 = vld [vmem:[%s9 + $0x5c] sm:$0xff]
    %v2055 = vld [vmem:[%s9 + $0x64] sm:$0xff]
    %v2056 = vld [vmem:[%s9 + $0x6c] sm:$0xf]
    %v2057 = vld [vmem:[%s9 + $0x70] sm:$0xff]
    %v2058 = vld [vmem:[%s9 + $0x78] sm:$0xff]
    %v2059 = vld [vmem:[%s9 + $0x80] sm:$0xff]
    %v2060 = vld [vmem:[%s9 + $0x88] sm:$0xf]
    %v2061 = vld [vmem:[%s9 + $0x8c] sm:$0xff]
    %v2062 = vld [vmem:[%s9 + $0x94] sm:$0xff]
    %v2063 = vld [vmem:[%s9 + $0x9c] sm:$0xff]
    %v2064 = vld [vmem:[%s9 + $0xa4] sm:$0xf]
    %v2065 = vld [vmem:[%s9 + $0xa8] sm:$0xff]
    %v2066 = vld [vmem:[%s9 + $0xb0] sm:$0xff]
    %v2067 = vld [vmem:[%s9 + $0xb8] sm:$0xff]
    %v2068 = vld [vmem:[%s9 + $0xc0] sm:$0xf]
    %v2069 = vld [vmem:[%s9 + $0xc4] sm:$0xff]
    %v2070 = vld [vmem:[%s9 + $0xcc] sm:$0xff]
    %v2071 = vld [vmem:[%s9 + $0xd4] sm:$0xff]
    %v2072 = vld [vmem:[%s9 + $0xdc] sm:$0xf]
    %v2073 = vld [vmem:[%s9 + $0xe0] sm:$0xff]
    %v2074 = vld [vmem:[%s9 + $0xe8] sm:$0xff]
    %v2075 = vld [vmem:[%s9 + $0xf0] sm:$0xff]
    %v2076 = vld [vmem:[%s9 + $0xf8] sm:$0xf]
    %v2077 = vld [vmem:[%s9 + $0xfc] sm:$0xff]
    %v2078 = vld [vmem:[%s9 + $0x104] sm:$0xff]
    %v2079 = vld [vmem:[%s9 + $0x10c] sm:$0xff]
    %v2080 = vld [vmem:[%s9 + $0x114] sm:$0xf]
    %v2081 = vld [vmem:[%s9 + $0x118] sm:$0xff]
    %v2082 = vld [vmem:[%s9 + $0x120] sm:$0xff]
    %v2083 = vld [vmem:[%s9 + $0x128] sm:$0xff]
    %v2084 = vld [vmem:[%s9 + $0x130] sm:$0xf]
    %v2085 = vld [vmem:[%s9 + $0x134] sm:$0xff]
    %v2086 = vld [vmem:[%s9 + $0x13c] sm:$0xff]
    %v2087 = vld [vmem:[%s9 + $0x144] sm:$0xff]
    %v2088 = vld [vmem:[%s9 + $0x14c] sm:$0xf]
    %v2089 = vld [vmem:[%s9 + $0x150] sm:$0xff]
    %v2090 = vld [vmem:[%s9 + $0x158] sm:$0xff]
    %v2091 = vld [vmem:[%s9 + $0x160] sm:$0xff]
    %v2092 = vld [vmem:[%s9 + $0x168] sm:$0xf]
    %v2093 = vld [vmem:[%s9 + $0x16c] sm:$0xff]
    %v2094 = vld [vmem:[%s9 + $0x174] sm:$0xff]
    %v2095 = vld [vmem:[%s9 + $0x17c] sm:$0xff]
    %v2096 = vld [vmem:[%s9 + $0x184] sm:$0xf]
    %v2097 = vld [vmem:[%s9 + $0x188] sm:$0xff]
    %v2098 = vld [vmem:[%s9 + $0x190] sm:$0xff]
    %v2099 = vld [vmem:[%s9 + $0x198] sm:$0xff]
    %v2100 = vld [vmem:[%s9 + $0x1a0] sm:$0xf]
    %v2101 = vld [vmem:[%s9 + $0x1a4] sm:$0xff]
    %v2102 = vld [vmem:[%s9 + $0x1ac] sm:$0xff]
    %v2103 = vld [vmem:[%s9 + $0x1b4] sm:$0xff]
    %v2104 = vld [vmem:[%s9 + $0x1bc] sm:$0xf]
    %v2105 = vld [vmem:[%s9 + $0x1c0] sm:$0xff]
    %v2106 = vld [vmem:[%s9 + $0x1c8] sm:$0xff]
    %v2107 = vld [vmem:[%s9 + $0x1d0] sm:$0xff]
    %v2108 = vld [vmem:[%s9 + $0x1d8] sm:$0xf]
    %v2109 = vld [vmem:[%s9 + $0x1dc] sm:$0xff]
    %v2110 = vld [vmem:[%s9 + $0x1e4] sm:$0xff]
    %v2111 = vld [vmem:[%s9 + $0x1ec] sm:$0xff]
    %v2112 = vld [vmem:[%s9 + $0x1f4] sm:$0xf]
    %v2113 = vld [vmem:[%s9 + $0x1f8] sm:$0xff]
    %v2114 = vld [vmem:[%s9 + $0x200] sm:$0xff]
    %v2115 = vld [vmem:[%s9 + $0x208] sm:$0xff]
    %v2116 = vld [vmem:[%s9 + $0x210] sm:$0xf]
    %v2117 = vld [vmem:[%s9 + $0x214] sm:$0xff]
    %v2118 = vld [vmem:[%s9 + $0x21c] sm:$0xff]
    %v2119 = vld [vmem:[%s9 + $0x224] sm:$0xff]
    %v2120 = vld [vmem:[%s9 + $0x22c] sm:$0xf]
    %v2121 = vld [vmem:[%s9 + $0x230] sm:$0xff]
    %v2122 = vld [vmem:[%s9 + $0x238] sm:$0xff]
    %v2123 = vld [vmem:[%s9 + $0x240] sm:$0xff]
    %v2124 = vld [vmem:[%s9 + $0x248] sm:$0xf]
    %v2125 = vld [vmem:[%s9 + $0x24c] sm:$0xff]
    %v2126 = vld [vmem:[%s9 + $0x254] sm:$0xff]
    %v2127 = vld [vmem:[%s9 + $0x25c] sm:$0xff]
    %v2128 = vld [vmem:[%s9 + $0x264] sm:$0xf]
    %v2129 = vld [vmem:[%s9 + $0x268] sm:$0xff]
    %v2130 = vld [vmem:[%s9 + $0x270] sm:$0xff]
    %v2131 = vld [vmem:[%s9 + $0x278] sm:$0xff]
    %v2132 = vld [vmem:[%s9 + $0x280] sm:$0xf]
    %v2133 = vld [vmem:[%s9 + $0x284] sm:$0xff]
    %v2134 = vld [vmem:[%s9 + $0x28c] sm:$0xff]
    %v2135 = vld [vmem:[%s9 + $0x294] sm:$0xff]
    %v2136 = vld [vmem:[%s9 + $0x29c] sm:$0xf]
    %v2137 = vld [vmem:[%s9 + $0x2a0] sm:$0xff]
    %v2138 = vld [vmem:[%s9 + $0x2a8] sm:$0xff]
    %v2139 = vld [vmem:[%s9 + $0x2b0] sm:$0xff]
    %v2140 = vld [vmem:[%s9 + $0x2b8] sm:$0xf]
    %v2141 = vld [vmem:[%s9 + $0x2bc] sm:$0xff]
    %v2142 = vld [vmem:[%s9 + $0x2c4] sm:$0xff]
    %v2143 = vld [vmem:[%s9 + $0x2cc] sm:$0xff]
    %v2144 = vld [vmem:[%s9 + $0x2d4] sm:$0xf]
    %v2145 = vld [vmem:[%s9 + $0x2d8] sm:$0xff]
    %v2146 = vld [vmem:[%s9 + $0x2e0] sm:$0xff]
    %v2147 = vld [vmem:[%s9 + $0x2e8] sm:$0xff]
    %v2148 = vld [vmem:[%s9 + $0x2f0] sm:$0xf]
    %v2149 = vld [vmem:[%s9 + $0x2f4] sm:$0xff]
    %v2150 = vld [vmem:[%s9 + $0x2fc] sm:$0xff]
    %v2151 = vld [vmem:[%s9 + $0x304] sm:$0xff]
    %v2152 = vld [vmem:[%s9 + $0x30c] sm:$0xf]
    %v2153 = vld [vmem:[%s9 + $0x310] sm:$0xff]
    %v2154 = vld [vmem:[%s9 + $0x318] sm:$0xff]
    %v2155 = vld [vmem:[%s9 + $0x320] sm:$0xff]
    %v2156 = vld [vmem:[%s9 + $0x328] sm:$0xf]
    %v2157 = vld [vmem:[%s9 + $0x32c] sm:$0xff]
    %v2158 = vld [vmem:[%s9 + $0x334] sm:$0xff]
    %v2159 = vld [vmem:[%s9 + $0x33c] sm:$0xff]
    %v2160 = vld [vmem:[%s9 + $0x344] sm:$0xf]
    %v2161 = vld [vmem:[%s9 + $0x348] sm:$0xff]
    %v2162 = vld [vmem:[%s9 + $0x350] sm:$0xff]
    %v2163 = vld [vmem:[%s9 + $0x358] sm:$0xff]
    %v2164 = vld [vmem:[%s9 + $0x360] sm:$0xf]
    %v2165 = vld [vmem:[%s9 + $0x364] sm:$0xff]
    %v2166 = vld [vmem:[%s9 + $0x36c] sm:$0xff]
    %v2167 = vld [vmem:[%s9 + $0x374] sm:$0xff]
    %v2168 = vld [vmem:[%s9 + $0x37c] sm:$0xf]
    %v2169 = vld [vmem:[%s9 + $0x380] sm:$0xff]
    %v2170 = vld [vmem:[%s9 + $0x388] sm:$0xff]
    %v2171 = vld [vmem:[%s9 + $0x390] sm:$0xff]
    %v2172 = vld [vmem:[%s9 + $0x398] sm:$0xf]
    %v2173 = vld [vmem:[%s9 + $0x39c] sm:$0xff]
    %v2174 = vld [vmem:[%s9 + $0x3a4] sm:$0xff]
    %v2175 = vld [vmem:[%s9 + $0x3ac] sm:$0xff]
    %v2176 = vld [vmem:[%s9 + $0x3b4] sm:$0xf]
    %v2177 = vld [vmem:[%s9 + $0x3b8] sm:$0xff]
    %v2178 = vld [vmem:[%s9 + $0x3c0] sm:$0xff]
    %v2179 = vld [vmem:[%s9 + $0x3c8] sm:$0xff]
    %v2180 = vld [vmem:[%s9 + $0x3d0] sm:$0xf]
    %v2181 = vld [vmem:[%s9 + $0x3d4] sm:$0xff]
    %v2182 = vld [vmem:[%s9 + $0x3dc] sm:$0xff]
    %v2183 = vld [vmem:[%s9 + $0x3e4] sm:$0xff]
    %v2184 = vld [vmem:[%s9 + $0x3ec] sm:$0xf]
    %v2185 = vld [vmem:[%s9 + $0x3f0] sm:$0xff]
    %v2186 = vld [vmem:[%s9 + $0x3f8] sm:$0xff]
    %v2187 = vld [vmem:[%s9 + $0x400] sm:$0xff]
    %v2188 = vld [vmem:[%s9 + $0x408] sm:$0xf]
    %v2189 = vld [vmem:[%s9 + $0x40c] sm:$0x33]
    %v2190 = vld [vmem:[%s9 + $0x414] sm:$0x33]
    %v2191 = vld [vmem:[%s9 + $0x41c] sm:$0x33]
    %v2192 = vld [vmem:[%s9 + $0x424] sm:$0x3]
    %v2193 = vld [vmem:[%s10] sm:$0x7f]
    %v2195 = vlaneseq
    %v2196 = vshrl.u32 %v2195, 7
    %v2197 = vsub.s32 0, %v2196
    %v2198 = vrot.slane %v2193, %v2197
    %v2199 = vlaneseq
    %v2200 = vshrl.u32 %v2199, 7
    %v2201 = vsub.s32 1, %v2200
    %v2202 = vrot.slane %v2193, %v2201
    %v2203 = vlaneseq
    %v2204 = vshrl.u32 %v2203, 7
    %v2205 = vsub.s32 2, %v2204
    %v2206 = vrot.slane %v2193, %v2205
    %v2207 = vlaneseq
    %v2208 = vshrl.u32 %v2207, 7
    %v2209 = vsub.s32 3, %v2208
    %v2210 = vrot.slane %v2193, %v2209
    %v2211 = vlaneseq
    %v2212 = vshrl.u32 %v2211, 7
    %v2213 = vsub.s32 4, %v2212
    %v2214 = vrot.slane %v2193, %v2213
    %v2215 = vlaneseq
    %v2216 = vshrl.u32 %v2215, 7
    %v2217 = vsub.s32 5, %v2216
    %v2218 = vrot.slane %v2193, %v2217
    %v2219 = vlaneseq
    %v2220 = vshrl.u32 %v2219, 7
    %v2221 = vsub.s32 6, %v2220
    %v2222 = vrot.slane %v2193, %v2221
    %v2382 = vunpack.c.l.b16 %v2041
    %v2383 = vunpack.c.h.b16 %v2041
    %v2384 = vunpack.c.l.b16 %v2042
    %v2385 = vunpack.c.h.b16 %v2042
    %v2386 = vunpack.c.l.b16 %v2043
    %v2387 = vunpack.c.h.b16 %v2043
    %v2388 = vunpack.c.l.b16 %v2044
    %v2389 = vunpack.c.l.b16 %v2045
    %v2390 = vunpack.c.h.b16 %v2045
    %v2391 = vunpack.c.l.b16 %v2046
    %v2392 = vunpack.c.h.b16 %v2046
    %v2393 = vunpack.c.l.b16 %v2047
    %v2394 = vunpack.c.h.b16 %v2047
    %v2395 = vunpack.c.l.b16 %v2048
    %v2396 = vunpack.c.l.b16 %v2049
    %v2397 = vunpack.c.h.b16 %v2049
    %v2398 = vunpack.c.l.b16 %v2050
    %v2399 = vunpack.c.h.b16 %v2050
    %v2400 = vunpack.c.l.b16 %v2051
    %v2401 = vunpack.c.h.b16 %v2051
    %v2402 = vunpack.c.l.b16 %v2052
    %v2403 = vunpack.c.l.b16 %v2053
    %v2404 = vunpack.c.h.b16 %v2053
    %v2405 = vunpack.c.l.b16 %v2054
    %v2406 = vunpack.c.h.b16 %v2054
    %v2407 = vunpack.c.l.b16 %v2055
    %v2408 = vunpack.c.h.b16 %v2055
    %v2409 = vunpack.c.l.b16 %v2056
    %v2410 = vunpack.c.l.b16 %v2057
    %v2411 = vunpack.c.h.b16 %v2057
    %v2412 = vunpack.c.l.b16 %v2058
    %v2413 = vunpack.c.h.b16 %v2058
    %v2414 = vunpack.c.l.b16 %v2059
    %v2415 = vunpack.c.h.b16 %v2059
    %v2416 = vunpack.c.l.b16 %v2060
    %v2417 = vunpack.c.l.b16 %v2061
    %v2418 = vunpack.c.h.b16 %v2061
    %v2419 = vunpack.c.l.b16 %v2062
    %v2420 = vunpack.c.h.b16 %v2062
    %v2421 = vunpack.c.l.b16 %v2063
    %v2422 = vunpack.c.h.b16 %v2063
    %v2423 = vunpack.c.l.b16 %v2064
    %v2424 = vunpack.c.l.b16 %v2065
    %v2425 = vunpack.c.h.b16 %v2065
    %v2426 = vunpack.c.l.b16 %v2066
    %v2427 = vunpack.c.h.b16 %v2066
    %v2428 = vunpack.c.l.b16 %v2067
    %v2429 = vunpack.c.h.b16 %v2067
    %v2430 = vunpack.c.l.b16 %v2068
    %v2431 = vunpack.c.l.b16 %v2069
    %v2432 = vunpack.c.h.b16 %v2069
    %v2433 = vunpack.c.l.b16 %v2070
    %v2434 = vunpack.c.h.b16 %v2070
    %v2435 = vunpack.c.l.b16 %v2071
    %v2436 = vunpack.c.h.b16 %v2071
    %v2437 = vunpack.c.l.b16 %v2072
    %v2438 = vunpack.c.l.b16 %v2073
    %v2439 = vunpack.c.h.b16 %v2073
    %v2440 = vunpack.c.l.b16 %v2074
    %v2441 = vunpack.c.h.b16 %v2074
    %v2442 = vunpack.c.l.b16 %v2075
    %v2443 = vunpack.c.h.b16 %v2075
    %v2444 = vunpack.c.l.b16 %v2076
    %v2445 = vunpack.c.l.b16 %v2077
    %v2446 = vunpack.c.h.b16 %v2077
    %v2447 = vunpack.c.l.b16 %v2078
    %v2448 = vunpack.c.h.b16 %v2078
    %v2449 = vunpack.c.l.b16 %v2079
    %v2450 = vunpack.c.h.b16 %v2079
    %v2451 = vunpack.c.l.b16 %v2080
    %v2452 = vunpack.c.l.b16 %v2081
    %v2453 = vunpack.c.h.b16 %v2081
    %v2454 = vunpack.c.l.b16 %v2082
    %v2455 = vunpack.c.h.b16 %v2082
    %v2456 = vunpack.c.l.b16 %v2083
    %v2457 = vunpack.c.h.b16 %v2083
    %v2458 = vunpack.c.l.b16 %v2084
    %v2459 = vunpack.c.l.b16 %v2085
    %v2460 = vunpack.c.h.b16 %v2085
    %v2461 = vunpack.c.l.b16 %v2086
    %v2462 = vunpack.c.h.b16 %v2086
    %v2463 = vunpack.c.l.b16 %v2087
    %v2464 = vunpack.c.h.b16 %v2087
    %v2465 = vunpack.c.l.b16 %v2088
    %v2466 = vunpack.c.l.b16 %v2089
    %v2467 = vunpack.c.h.b16 %v2089
    %v2468 = vunpack.c.l.b16 %v2090
    %v2469 = vunpack.c.h.b16 %v2090
    %v2470 = vunpack.c.l.b16 %v2091
    %v2471 = vunpack.c.h.b16 %v2091
    %v2472 = vunpack.c.l.b16 %v2092
    %v2473 = vunpack.c.l.b16 %v2093
    %v2474 = vunpack.c.h.b16 %v2093
    %v2475 = vunpack.c.l.b16 %v2094
    %v2476 = vunpack.c.h.b16 %v2094
    %v2477 = vunpack.c.l.b16 %v2095
    %v2478 = vunpack.c.h.b16 %v2095
    %v2479 = vunpack.c.l.b16 %v2096
    %v2480 = vunpack.c.l.b16 %v2097
    %v2481 = vunpack.c.h.b16 %v2097
    %v2482 = vunpack.c.l.b16 %v2098
    %v2483 = vunpack.c.h.b16 %v2098
    %v2484 = vunpack.c.l.b16 %v2099
    %v2485 = vunpack.c.h.b16 %v2099
    %v2486 = vunpack.c.l.b16 %v2100
    %v2487 = vunpack.c.l.b16 %v2101
    %v2488 = vunpack.c.h.b16 %v2101
    %v2489 = vunpack.c.l.b16 %v2102
    %v2490 = vunpack.c.h.b16 %v2102
    %v2491 = vunpack.c.l.b16 %v2103
    %v2492 = vunpack.c.h.b16 %v2103
    %v2493 = vunpack.c.l.b16 %v2104
    %v2494 = vunpack.c.l.b16 %v2105
    %v2495 = vunpack.c.h.b16 %v2105
    %v2496 = vunpack.c.l.b16 %v2106
    %v2497 = vunpack.c.h.b16 %v2106
    %v2498 = vunpack.c.l.b16 %v2107
    %v2499 = vunpack.c.h.b16 %v2107
    %v2500 = vunpack.c.l.b16 %v2108
    %v2501 = vunpack.c.l.b16 %v2109
    %v2502 = vunpack.c.h.b16 %v2109
    %v2503 = vunpack.c.l.b16 %v2110
    %v2504 = vunpack.c.h.b16 %v2110
    %v2505 = vunpack.c.l.b16 %v2111
    %v2506 = vunpack.c.h.b16 %v2111
    %v2507 = vunpack.c.l.b16 %v2112
    %v2508 = vunpack.c.l.b16 %v2113
    %v2509 = vunpack.c.h.b16 %v2113
    %v2510 = vunpack.c.l.b16 %v2114
    %v2511 = vunpack.c.h.b16 %v2114
    %v2512 = vunpack.c.l.b16 %v2115
    %v2513 = vunpack.c.h.b16 %v2115
    %v2514 = vunpack.c.l.b16 %v2116
    %v2515 = vunpack.c.l.b16 %v2117
    %v2516 = vunpack.c.h.b16 %v2117
    %v2517 = vunpack.c.l.b16 %v2118
    %v2518 = vunpack.c.h.b16 %v2118
    %v2519 = vunpack.c.l.b16 %v2119
    %v2520 = vunpack.c.h.b16 %v2119
    %v2521 = vunpack.c.l.b16 %v2120
    %v2522 = vunpack.c.l.b16 %v2121
    %v2523 = vunpack.c.h.b16 %v2121
    %v2524 = vunpack.c.l.b16 %v2122
    %v2525 = vunpack.c.h.b16 %v2122
    %v2526 = vunpack.c.l.b16 %v2123
    %v2527 = vunpack.c.h.b16 %v2123
    %v2528 = vunpack.c.l.b16 %v2124
    %v2529 = vunpack.c.l.b16 %v2125
    %v2530 = vunpack.c.h.b16 %v2125
    %v2531 = vunpack.c.l.b16 %v2126
    %v2532 = vunpack.c.h.b16 %v2126
    %v2533 = vunpack.c.l.b16 %v2127
    %v2534 = vunpack.c.h.b16 %v2127
    %v2535 = vunpack.c.l.b16 %v2128
    %v2536 = vunpack.c.l.b16 %v2129
    %v2537 = vunpack.c.h.b16 %v2129
    %v2538 = vunpack.c.l.b16 %v2130
    %v2539 = vunpack.c.h.b16 %v2130
    %v2540 = vunpack.c.l.b16 %v2131
    %v2541 = vunpack.c.h.b16 %v2131
    %v2542 = vunpack.c.l.b16 %v2132
    %v2543 = vunpack.c.l.b16 %v2133
    %v2544 = vunpack.c.h.b16 %v2133
    %v2545 = vunpack.c.l.b16 %v2134
    %v2546 = vunpack.c.h.b16 %v2134
    %v2547 = vunpack.c.l.b16 %v2135
    %v2548 = vunpack.c.h.b16 %v2135
    %v2549 = vunpack.c.l.b16 %v2136
    %v2550 = vunpack.c.l.b16 %v2137
    %v2551 = vunpack.c.h.b16 %v2137
    %v2552 = vunpack.c.l.b16 %v2138
    %v2553 = vunpack.c.h.b16 %v2138
    %v2554 = vunpack.c.l.b16 %v2139
    %v2555 = vunpack.c.h.b16 %v2139
    %v2556 = vunpack.c.l.b16 %v2140
    %v2557 = vunpack.c.l.b16 %v2141
    %v2558 = vunpack.c.h.b16 %v2141
    %v2559 = vunpack.c.l.b16 %v2142
    %v2560 = vunpack.c.h.b16 %v2142
    %v2561 = vunpack.c.l.b16 %v2143
    %v2562 = vunpack.c.h.b16 %v2143
    %v2563 = vunpack.c.l.b16 %v2144
    %v2564 = vunpack.c.l.b16 %v2145
    %v2565 = vunpack.c.h.b16 %v2145
    %v2566 = vunpack.c.l.b16 %v2146
    %v2567 = vunpack.c.h.b16 %v2146
    %v2568 = vunpack.c.l.b16 %v2147
    %v2569 = vunpack.c.h.b16 %v2147
    %v2570 = vunpack.c.l.b16 %v2148
    %v2571 = vunpack.c.l.b16 %v2149
    %v2572 = vunpack.c.h.b16 %v2149
    %v2573 = vunpack.c.l.b16 %v2150
    %v2574 = vunpack.c.h.b16 %v2150
    %v2575 = vunpack.c.l.b16 %v2151
    %v2576 = vunpack.c.h.b16 %v2151
    %v2577 = vunpack.c.l.b16 %v2152
    %v2578 = vunpack.c.l.b16 %v2153
    %v2579 = vunpack.c.h.b16 %v2153
    %v2580 = vunpack.c.l.b16 %v2154
    %v2581 = vunpack.c.h.b16 %v2154
    %v2582 = vunpack.c.l.b16 %v2155
    %v2583 = vunpack.c.h.b16 %v2155
    %v2584 = vunpack.c.l.b16 %v2156
    %v2585 = vunpack.c.l.b16 %v2157
    %v2586 = vunpack.c.h.b16 %v2157
    %v2587 = vunpack.c.l.b16 %v2158
    %v2588 = vunpack.c.h.b16 %v2158
    %v2589 = vunpack.c.l.b16 %v2159
    %v2590 = vunpack.c.h.b16 %v2159
    %v2591 = vunpack.c.l.b16 %v2160
    %v2592 = vunpack.c.l.b16 %v2161
    %v2593 = vunpack.c.h.b16 %v2161
    %v2594 = vunpack.c.l.b16 %v2162
    %v2595 = vunpack.c.h.b16 %v2162
    %v2596 = vunpack.c.l.b16 %v2163
    %v2597 = vunpack.c.h.b16 %v2163
    %v2598 = vunpack.c.l.b16 %v2164
    %v2599 = vunpack.c.l.b16 %v2165
    %v2600 = vunpack.c.h.b16 %v2165
    %v2601 = vunpack.c.l.b16 %v2166
    %v2602 = vunpack.c.h.b16 %v2166
    %v2603 = vunpack.c.l.b16 %v2167
    %v2604 = vunpack.c.h.b16 %v2167
    %v2605 = vunpack.c.l.b16 %v2168
    %v2606 = vunpack.c.l.b16 %v2169
    %v2607 = vunpack.c.h.b16 %v2169
    %v2608 = vunpack.c.l.b16 %v2170
    %v2609 = vunpack.c.h.b16 %v2170
    %v2610 = vunpack.c.l.b16 %v2171
    %v2611 = vunpack.c.h.b16 %v2171
    %v2612 = vunpack.c.l.b16 %v2172
    %v2613 = vunpack.c.l.b16 %v2173
    %v2614 = vunpack.c.h.b16 %v2173
    %v2615 = vunpack.c.l.b16 %v2174
    %v2616 = vunpack.c.h.b16 %v2174
    %v2617 = vunpack.c.l.b16 %v2175
    %v2618 = vunpack.c.h.b16 %v2175
    %v2619 = vunpack.c.l.b16 %v2176
    %v2620 = vunpack.c.l.b16 %v2177
    %v2621 = vunpack.c.h.b16 %v2177
    %v2622 = vunpack.c.l.b16 %v2178
    %v2623 = vunpack.c.h.b16 %v2178
    %v2624 = vunpack.c.l.b16 %v2179
    %v2625 = vunpack.c.h.b16 %v2179
    %v2626 = vunpack.c.l.b16 %v2180
    %v2627 = vunpack.c.l.b16 %v2181
    %v2628 = vunpack.c.h.b16 %v2181
    %v2629 = vunpack.c.l.b16 %v2182
    %v2630 = vunpack.c.h.b16 %v2182
    %v2631 = vunpack.c.l.b16 %v2183
    %v2632 = vunpack.c.h.b16 %v2183
    %v2633 = vunpack.c.l.b16 %v2184
    %v2634 = vunpack.c.l.b16 %v2185
    %v2635 = vunpack.c.h.b16 %v2185
    %v2636 = vunpack.c.l.b16 %v2186
    %v2637 = vunpack.c.h.b16 %v2186
    %v2638 = vunpack.c.l.b16 %v2187
    %v2639 = vunpack.c.h.b16 %v2187
    %v2640 = vunpack.c.l.b16 %v2188
    %v2641 = vunpack.c.l.b16 %v2189
    %v2642 = vunpack.c.h.b16 %v2189
    %v2643 = vunpack.c.l.b16 %v2190
    %v2644 = vunpack.c.h.b16 %v2190
    %v2645 = vunpack.c.l.b16 %v2191
    %v2646 = vunpack.c.h.b16 %v2191
    %v2647 = vunpack.c.l.b16 %v2192
    %v2648 = vpack.c.b16 %v2389, %v2382
    %v2649 = vpack.c.b16 %v2390, %v2383
    %v2650 = vpack.c.b16 %v2391, %v2384
    %v2651 = vpack.c.b16 %v2392, %v2385
    %v2652 = vpack.c.b16 %v2393, %v2386
    %v2653 = vpack.c.b16 %v2394, %v2387
    %v2654 = vpack.c.b16 %v2395, %v2388
    %v2655 = vpack.c.b16 %v2403, %v2396
    %v2656 = vpack.c.b16 %v2404, %v2397
    %v2657 = vpack.c.b16 %v2405, %v2398
    %v2658 = vpack.c.b16 %v2406, %v2399
    %v2659 = vpack.c.b16 %v2407, %v2400
    %v2660 = vpack.c.b16 %v2408, %v2401
    %v2661 = vpack.c.b16 %v2409, %v2402
    %v2662 = vpack.c.b16 %v2417, %v2410
    %v2663 = vpack.c.b16 %v2418, %v2411
    %v2664 = vpack.c.b16 %v2419, %v2412
    %v2665 = vpack.c.b16 %v2420, %v2413
    %v2666 = vpack.c.b16 %v2421, %v2414
    %v2667 = vpack.c.b16 %v2422, %v2415
    %v2668 = vpack.c.b16 %v2423, %v2416
    %v2669 = vpack.c.b16 %v2431, %v2424
    %v2670 = vpack.c.b16 %v2432, %v2425
    %v2671 = vpack.c.b16 %v2433, %v2426
    %v2672 = vpack.c.b16 %v2434, %v2427
    %v2673 = vpack.c.b16 %v2435, %v2428
    %v2674 = vpack.c.b16 %v2436, %v2429
    %v2675 = vpack.c.b16 %v2437, %v2430
    %v2676 = vpack.c.b16 %v2445, %v2438
    %v2677 = vpack.c.b16 %v2446, %v2439
    %v2678 = vpack.c.b16 %v2447, %v2440
    %v2679 = vpack.c.b16 %v2448, %v2441
    %v2680 = vpack.c.b16 %v2449, %v2442
    %v2681 = vpack.c.b16 %v2450, %v2443
    %v2682 = vpack.c.b16 %v2451, %v2444
    %v2683 = vpack.c.b16 %v2459, %v2452
    %v2684 = vpack.c.b16 %v2460, %v2453
    %v2685 = vpack.c.b16 %v2461, %v2454
    %v2686 = vpack.c.b16 %v2462, %v2455
    %v2687 = vpack.c.b16 %v2463, %v2456
    %v2688 = vpack.c.b16 %v2464, %v2457
    %v2689 = vpack.c.b16 %v2465, %v2458
    %v2690 = vpack.c.b16 %v2473, %v2466
    %v2691 = vpack.c.b16 %v2474, %v2467
    %v2692 = vpack.c.b16 %v2475, %v2468
    %v2693 = vpack.c.b16 %v2476, %v2469
    %v2694 = vpack.c.b16 %v2477, %v2470
    %v2695 = vpack.c.b16 %v2478, %v2471
    %v2696 = vpack.c.b16 %v2479, %v2472
    %v2697 = vpack.c.b16 %v2487, %v2480
    %v2698 = vpack.c.b16 %v2488, %v2481
    %v2699 = vpack.c.b16 %v2489, %v2482
    %v2700 = vpack.c.b16 %v2490, %v2483
    %v2701 = vpack.c.b16 %v2491, %v2484
    %v2702 = vpack.c.b16 %v2492, %v2485
    %v2703 = vpack.c.b16 %v2493, %v2486
    %v2704 = vpack.c.b16 %v2501, %v2494
    %v2705 = vpack.c.b16 %v2502, %v2495
    %v2706 = vpack.c.b16 %v2503, %v2496
    %v2707 = vpack.c.b16 %v2504, %v2497
    %v2708 = vpack.c.b16 %v2505, %v2498
    %v2709 = vpack.c.b16 %v2506, %v2499
    %v2710 = vpack.c.b16 %v2507, %v2500
    %v2711 = vpack.c.b16 %v2515, %v2508
    %v2712 = vpack.c.b16 %v2516, %v2509
    %v2713 = vpack.c.b16 %v2517, %v2510
    %v2714 = vpack.c.b16 %v2518, %v2511
    %v2715 = vpack.c.b16 %v2519, %v2512
    %v2716 = vpack.c.b16 %v2520, %v2513
    %v2717 = vpack.c.b16 %v2521, %v2514
    %v2718 = vpack.c.b16 %v2529, %v2522
    %v2719 = vpack.c.b16 %v2530, %v2523
    %v2720 = vpack.c.b16 %v2531, %v2524
    %v2721 = vpack.c.b16 %v2532, %v2525
    %v2722 = vpack.c.b16 %v2533, %v2526
    %v2723 = vpack.c.b16 %v2534, %v2527
    %v2724 = vpack.c.b16 %v2535, %v2528
    %v2725 = vpack.c.b16 %v2543, %v2536
    %v2726 = vpack.c.b16 %v2544, %v2537
    %v2727 = vpack.c.b16 %v2545, %v2538
    %v2728 = vpack.c.b16 %v2546, %v2539
    %v2729 = vpack.c.b16 %v2547, %v2540
    %v2730 = vpack.c.b16 %v2548, %v2541
    %v2731 = vpack.c.b16 %v2549, %v2542
    %v2732 = vpack.c.b16 %v2557, %v2550
    %v2733 = vpack.c.b16 %v2558, %v2551
    %v2734 = vpack.c.b16 %v2559, %v2552
    %v2735 = vpack.c.b16 %v2560, %v2553
    %v2736 = vpack.c.b16 %v2561, %v2554
    %v2737 = vpack.c.b16 %v2562, %v2555
    %v2738 = vpack.c.b16 %v2563, %v2556
    %v2739 = vpack.c.b16 %v2571, %v2564
    %v2740 = vpack.c.b16 %v2572, %v2565
    %v2741 = vpack.c.b16 %v2573, %v2566
    %v2742 = vpack.c.b16 %v2574, %v2567
    %v2743 = vpack.c.b16 %v2575, %v2568
    %v2744 = vpack.c.b16 %v2576, %v2569
    %v2745 = vpack.c.b16 %v2577, %v2570
    %v2746 = vpack.c.b16 %v2585, %v2578
    %v2747 = vpack.c.b16 %v2586, %v2579
    %v2748 = vpack.c.b16 %v2587, %v2580
    %v2749 = vpack.c.b16 %v2588, %v2581
    %v2750 = vpack.c.b16 %v2589, %v2582
    %v2751 = vpack.c.b16 %v2590, %v2583
    %v2752 = vpack.c.b16 %v2591, %v2584
    %v2753 = vpack.c.b16 %v2599, %v2592
    %v2754 = vpack.c.b16 %v2600, %v2593
    %v2755 = vpack.c.b16 %v2601, %v2594
    %v2756 = vpack.c.b16 %v2602, %v2595
    %v2757 = vpack.c.b16 %v2603, %v2596
    %v2758 = vpack.c.b16 %v2604, %v2597
    %v2759 = vpack.c.b16 %v2605, %v2598
    %v2760 = vpack.c.b16 %v2613, %v2606
    %v2761 = vpack.c.b16 %v2614, %v2607
    %v2762 = vpack.c.b16 %v2615, %v2608
    %v2763 = vpack.c.b16 %v2616, %v2609
    %v2764 = vpack.c.b16 %v2617, %v2610
    %v2765 = vpack.c.b16 %v2618, %v2611
    %v2766 = vpack.c.b16 %v2619, %v2612
    %v2767 = vpack.c.b16 %v2627, %v2620
    %v2768 = vpack.c.b16 %v2628, %v2621
    %v2769 = vpack.c.b16 %v2629, %v2622
    %v2770 = vpack.c.b16 %v2630, %v2623
    %v2771 = vpack.c.b16 %v2631, %v2624
    %v2772 = vpack.c.b16 %v2632, %v2625
    %v2773 = vpack.c.b16 %v2633, %v2626
    %v2774 = vpack.c.b16 %v2641, %v2634
    %v2775 = vpack.c.b16 %v2642, %v2635
    %v2776 = vpack.c.b16 %v2643, %v2636
    %v2777 = vpack.c.b16 %v2644, %v2637
    %v2778 = vpack.c.b16 %v2645, %v2638
    %v2779 = vpack.c.b16 %v2646, %v2639
    %v2780 = vpack.c.b16 %v2647, %v2640
    %v2908 = vsel %vm1819, %v2040, 0
    %v2911 = vsel %vm1823, %v2774, 0
    %v2914 = vsel %vm1823, %v2775, 0
    %v2917 = vsel %vm1823, %v2776, 0
    %v2920 = vsel %vm1823, %v2777, 0
    %v2923 = vsel %vm1823, %v2778, 0
    %v2926 = vsel %vm1823, %v2779, 0
    %v2929 = vsel %vm1823, %v2780, 0
    %2931 = vmatprep.subr.bf16.mxu0 %v2649
    %2932 = vmatpush1.bf16.msra.mxu0 %v2648
    %2933 = vmatprep.subr.bf16.mxu0 %v2656
    %2934 = vmatpush1.bf16.msra.mxu0 %v2655
    %2935 = vmatprep.subr.bf16.mxu0 %v2663
    %2936 = vmatpush1.bf16.msra.mxu0 %v2662
    %2937 = vmatprep.subr.bf16.mxu0 %v2670
    %2938 = vmatpush1.bf16.msra.mxu0 %v2669
    %2939 = vmatprep.subr.bf16.mxu0 %v2677
    %2940 = vmatpush1.bf16.msra.mxu0 %v2676
    %2941 = vmatprep.subr.bf16.mxu0 %v2684
    %2942 = vmatpush1.bf16.msra.mxu0 %v2683
    %2943 = vmatprep.subr.bf16.mxu0 %v2691
    %2944 = vmatpush1.bf16.msra.mxu0 %v2690
    %2945 = vmatprep.subr.bf16.mxu0 %v2698
    %2946 = vmatpush1.bf16.msra.mxu0 %v2697
    %2947 = vmatprep.subr.bf16.mxu0 %v2705
    %2948 = vmatpush1.bf16.msra.mxu0 %v2704
    %2949 = vmatprep.subr.bf16.mxu0 %v2712
    %2950 = vmatpush1.bf16.msra.mxu0 %v2711
    %2951 = vmatprep.subr.bf16.mxu0 %v2719
    %2952 = vmatpush1.bf16.msra.mxu0 %v2718
    %2953 = vmatprep.subr.bf16.mxu0 %v2726
    %2954 = vmatpush1.bf16.msra.mxu0 %v2725
    %2955 = vmatprep.subr.bf16.mxu0 %v2733
    %2956 = vmatpush1.bf16.msra.mxu0 %v2732
    %2957 = vmatprep.subr.bf16.mxu0 %v2740
    %2958 = vmatpush1.bf16.msra.mxu0 %v2739
    %2959 = vmatprep.subr.bf16.mxu0 %v2747
    %2960 = vmatpush1.bf16.msra.mxu0 %v2746
    %2961 = vmatprep.subr.bf16.mxu0 %v2754
    %2962 = vmatpush1.bf16.msra.mxu0 %v2753
    %2963 = vmatprep.mubr.bf16.mxu0 %v2039
    %2964 = vmatmul.mubr.bf16.gmra.mrb[0].mxu0 %v2038
    %v2965 = vpop.f32.mrb[0].mxu0
    %v2966 = vadd.f32 %v2198, %v2965
    %v2967 = vpop.f32.mrb[0].mxu0
    %v2968 = vadd.f32 %v2202, %v2967
    %v2969 = vpop.f32.mrb[0].mxu0
    %v2970 = vpop.f32.mrb[0].mxu0
    %2971 = vdwg.mxu0
    %2972 = vmatprep.subr.bf16.mxu0 %v2761
    %2973 = vmatpush1.bf16.msra.mxu0 %v2760
    %2974 = vmatprep.subr.bf16.mxu0 %v2768
    %2975 = vmatpush1.bf16.msra.mxu0 %v2767
    %2976 = vmatprep.subr.bf16.mxu0 %v2914
    %2977 = vmatpush1.bf16.msra.mxu0 %v2911
    %2978 = vmatprep.subr.bf16.mxu0 0
    %2979 = vmatpush1.bf16.msra.mxu0 0
    %2980 = vmatprep.subr.bf16.mxu0 0
    %2981 = vmatpush1.bf16.msra.mxu0 0
    %2982 = vmatprep.subr.bf16.mxu0 0
    %2983 = vmatpush1.bf16.msra.mxu0 0
    %2984 = vmatprep.subr.bf16.mxu0 0
    %2985 = vmatpush1.bf16.msra.mxu0 0
    %2986 = vmatprep.subr.bf16.mxu0 0
    %2987 = vmatpush1.bf16.msra.mxu0 0
    %2988 = vmatprep.subr.bf16.mxu0 0
    %2989 = vmatpush1.bf16.msra.mxu0 0
    %2990 = vmatprep.subr.bf16.mxu0 0
    %2991 = vmatpush1.bf16.msra.mxu0 0
    %2992 = vmatprep.subr.bf16.mxu0 0
    %2993 = vmatpush1.bf16.msra.mxu0 0
    %2994 = vmatprep.subr.bf16.mxu0 0
    %2995 = vmatpush1.bf16.msra.mxu0 0
    %2996 = vmatprep.subr.bf16.mxu0 0
    %2997 = vmatpush1.bf16.msra.mxu0 0
    %2998 = vmatprep.subr.bf16.mxu0 0
    %2999 = vmatpush1.bf16.msra.mxu0 0
    %3000 = vmatprep.subr.bf16.mxu0 0
    %3001 = vmatpush1.bf16.msra.mxu0 0
    %3002 = vmatprep.subr.bf16.mxu0 0
    %3003 = vmatpush1.bf16.msra.mxu0 0
    %3004 = vmatprep.mubr.bf16.mxu0 0
    %3005 = vmatmul.mubr.bf16.gmra.mrb[0].mxu0 %v2908
    %v3006 = vpop.f32.mrb[0].mxu0
    %v3007 = vadd.f32 %v2966, %v3006
    %v3008 = vpop.f32.mrb[0].mxu0
    %v3009 = vadd.f32 %v2968, %v3008
    %v3010 = vpop.f32.mrb[0].mxu0
    %v3011 = vpop.f32.mrb[0].mxu0
    %3012 = vdwg.mxu0
    %3013 = vmatprep.subr.bf16.mxu0 %v2651
    %3014 = vmatpush1.bf16.msra.mxu0 %v2650
    %3015 = vmatprep.subr.bf16.mxu0 %v2658
    %3016 = vmatpush1.bf16.msra.mxu0 %v2657
    %3017 = vmatprep.subr.bf16.mxu0 %v2665
    %3018 = vmatpush1.bf16.msra.mxu0 %v2664
    %3019 = vmatprep.subr.bf16.mxu0 %v2672
    %3020 = vmatpush1.bf16.msra.mxu0 %v2671
    %3021 = vmatprep.subr.bf16.mxu0 %v2679
    %3022 = vmatpush1.bf16.msra.mxu0 %v2678
    %3023 = vmatprep.subr.bf16.mxu0 %v2686
    %3024 = vmatpush1.bf16.msra.mxu0 %v2685
    %3025 = vmatprep.subr.bf16.mxu0 %v2693
    %3026 = vmatpush1.bf16.msra.mxu0 %v2692
    %3027 = vmatprep.subr.bf16.mxu0 %v2700
    %3028 = vmatpush1.bf16.msra.mxu0 %v2699
    %3029 = vmatprep.subr.bf16.mxu0 %v2707
    %3030 = vmatpush1.bf16.msra.mxu0 %v2706
    %3031 = vmatprep.subr.bf16.mxu0 %v2714
    %3032 = vmatpush1.bf16.msra.mxu0 %v2713
    %3033 = vmatprep.subr.bf16.mxu0 %v2721
    %3034 = vmatpush1.bf16.msra.mxu0 %v2720
    %3035 = vmatprep.subr.bf16.mxu0 %v2728
    %3036 = vmatpush1.bf16.msra.mxu0 %v2727
    %3037 = vmatprep.subr.bf16.mxu0 %v2735
    %3038 = vmatpush1.bf16.msra.mxu0 %v2734
    %3039 = vmatprep.subr.bf16.mxu0 %v2742
    %3040 = vmatpush1.bf16.msra.mxu0 %v2741
    %3041 = vmatprep.subr.bf16.mxu0 %v2749
    %3042 = vmatpush1.bf16.msra.mxu0 %v2748
    %3043 = vmatprep.subr.bf16.mxu0 %v2756
    %3044 = vmatpush1.bf16.msra.mxu0 %v2755
    %3045 = vmatprep.mubr.bf16.mxu0 %v2039
    %3046 = vmatmul.mubr.bf16.gmra.mrb[0].mxu0 %v2038
    %v3047 = vpop.f32.mrb[0].mxu0
    %v3048 = vadd.f32 %v2206, %v3047
    %v3049 = vpop.f32.mrb[0].mxu0
    %v3050 = vadd.f32 %v2210, %v3049
    %v3051 = vpop.f32.mrb[0].mxu0
    %v3052 = vpop.f32.mrb[0].mxu0
    %3053 = vdwg.mxu0
    %3054 = vmatprep.subr.bf16.mxu0 %v2763
    %3055 = vmatpush1.bf16.msra.mxu0 %v2762
    %3056 = vmatprep.subr.bf16.mxu0 %v2770
    %3057 = vmatpush1.bf16.msra.mxu0 %v2769
    %3058 = vmatprep.subr.bf16.mxu0 %v2920
    %3059 = vmatpush1.bf16.msra.mxu0 %v2917
    %3060 = vmatprep.subr.bf16.mxu0 0
    %3061 = vmatpush1.bf16.msra.mxu0 0
    %3062 = vmatprep.subr.bf16.mxu0 0
    %3063 = vmatpush1.bf16.msra.mxu0 0
    %3064 = vmatprep.subr.bf16.mxu0 0
    %3065 = vmatpush1.bf16.msra.mxu0 0
    %3066 = vmatprep.subr.bf16.mxu0 0
    %3067 = vmatpush1.bf16.msra.mxu0 0
    %3068 = vmatprep.subr.bf16.mxu0 0
    %3069 = vmatpush1.bf16.msra.mxu0 0
    %3070 = vmatprep.subr.bf16.mxu0 0
    %3071 = vmatpush1.bf16.msra.mxu0 0
    %3072 = vmatprep.subr.bf16.mxu0 0
    %3073 = vmatpush1.bf16.msra.mxu0 0
    %3074 = vmatprep.subr.bf16.mxu0 0
    %3075 = vmatpush1.bf16.msra.mxu0 0
    %3076 = vmatprep.subr.bf16.mxu0 0
    %3077 = vmatpush1.bf16.msra.mxu0 0
    %3078 = vmatprep.subr.bf16.mxu0 0
    %3079 = vmatpush1.bf16.msra.mxu0 0
    %3080 = vmatprep.subr.bf16.mxu0 0
    %3081 = vmatpush1.bf16.msra.mxu0 0
    %3082 = vmatprep.subr.bf16.mxu0 0
    %3083 = vmatpush1.bf16.msra.mxu0 0
    %3084 = vmatprep.subr.bf16.mxu0 0
    %3085 = vmatpush1.bf16.msra.mxu0 0
    %3086 = vmatprep.mubr.bf16.mxu0 0
    %3087 = vmatmul.mubr.bf16.gmra.mrb[0].mxu0 %v2908
    %v3088 = vpop.f32.mrb[0].mxu0
    %v3089 = vadd.f32 %v3048, %v3088
    %v3090 = vpop.f32.mrb[0].mxu0
    %v3091 = vadd.f32 %v3050, %v3090
    %v3092 = vpop.f32.mrb[0].mxu0
    %v3093 = vpop.f32.mrb[0].mxu0
    %3094 = vdwg.mxu0
    %3095 = vmatprep.subr.bf16.mxu0 %v2653
    %3096 = vmatpush1.bf16.msra.mxu0 %v2652
    %3097 = vmatprep.subr.bf16.mxu0 %v2660
    %3098 = vmatpush1.bf16.msra.mxu0 %v2659
    %3099 = vmatprep.subr.bf16.mxu0 %v2667
    %3100 = vmatpush1.bf16.msra.mxu0 %v2666
    %3101 = vmatprep.subr.bf16.mxu0 %v2674
    %3102 = vmatpush1.bf16.msra.mxu0 %v2673
    %3103 = vmatprep.subr.bf16.mxu0 %v2681
    %3104 = vmatpush1.bf16.msra.mxu0 %v2680
    %3105 = vmatprep.subr.bf16.mxu0 %v2688
    %3106 = vmatpush1.bf16.msra.mxu0 %v2687
    %3107 = vmatprep.subr.bf16.mxu0 %v2695
    %3108 = vmatpush1.bf16.msra.mxu0 %v2694
    %3109 = vmatprep.subr.bf16.mxu0 %v2702
    %3110 = vmatpush1.bf16.msra.mxu0 %v2701
    %3111 = vmatprep.subr.bf16.mxu0 %v2709
    %3112 = vmatpush1.bf16.msra.mxu0 %v2708
    %3113 = vmatprep.subr.bf16.mxu0 %v2716
    %3114 = vmatpush1.bf16.msra.mxu0 %v2715
    %3115 = vmatprep.subr.bf16.mxu0 %v2723
    %3116 = vmatpush1.bf16.msra.mxu0 %v2722
    %3117 = vmatprep.subr.bf16.mxu0 %v2730
    %3118 = vmatpush1.bf16.msra.mxu0 %v2729
    %3119 = vmatprep.subr.bf16.mxu0 %v2737
    %3120 = vmatpush1.bf16.msra.mxu0 %v2736
    %3121 = vmatprep.subr.bf16.mxu0 %v2744
    %3122 = vmatpush1.bf16.msra.mxu0 %v2743
    %3123 = vmatprep.subr.bf16.mxu0 %v2751
    %3124 = vmatpush1.bf16.msra.mxu0 %v2750
    %3125 = vmatprep.subr.bf16.mxu0 %v2758
    %3126 = vmatpush1.bf16.msra.mxu0 %v2757
    %3127 = vmatprep.mubr.bf16.mxu0 %v2039
    %3128 = vmatmul.mubr.bf16.gmra.mrb[0].mxu0 %v2038
    %v3129 = vpop.f32.mrb[0].mxu0
    %v3130 = vadd.f32 %v2214, %v3129
    %v3131 = vpop.f32.mrb[0].mxu0
    %v3132 = vadd.f32 %v2218, %v3131
    %v3133 = vpop.f32.mrb[0].mxu0
    %v3134 = vpop.f32.mrb[0].mxu0
    %3135 = vdwg.mxu0
    %3136 = vmatprep.subr.bf16.mxu0 %v2765
    %3137 = vmatpush1.bf16.msra.mxu0 %v2764
    %3138 = vmatprep.subr.bf16.mxu0 %v2772
    %3139 = vmatpush1.bf16.msra.mxu0 %v2771
    %3140 = vmatprep.subr.bf16.mxu0 %v2926
    %3141 = vmatpush1.bf16.msra.mxu0 %v2923
    %3142 = vmatprep.subr.bf16.mxu0 0
    %3143 = vmatpush1.bf16.msra.mxu0 0
    %3144 = vmatprep.subr.bf16.mxu0 0
    %3145 = vmatpush1.bf16.msra.mxu0 0
    %3146 = vmatprep.subr.bf16.mxu0 0
    %3147 = vmatpush1.bf16.msra.mxu0 0
    %3148 = vmatprep.subr.bf16.mxu0 0
    %3149 = vmatpush1.bf16.msra.mxu0 0
    %3150 = vmatprep.subr.bf16.mxu0 0
    %3151 = vmatpush1.bf16.msra.mxu0 0
    %3152 = vmatprep.subr.bf16.mxu0 0
    %3153 = vmatpush1.bf16.msra.mxu0 0
    %3154 = vmatprep.subr.bf16.mxu0 0
    %3155 = vmatpush1.bf16.msra.mxu0 0
    %3156 = vmatprep.subr.bf16.mxu0 0
    %3157 = vmatpush1.bf16.msra.mxu0 0
    %3158 = vmatprep.subr.bf16.mxu0 0
    %3159 = vmatpush1.bf16.msra.mxu0 0
    %3160 = vmatprep.subr.bf16.mxu0 0
    %3161 = vmatpush1.bf16.msra.mxu0 0
    %3162 = vmatprep.subr.bf16.mxu0 0
    %3163 = vmatpush1.bf16.msra.mxu0 0
    %3164 = vmatprep.subr.bf16.mxu0 0
    %3165 = vmatpush1.bf16.msra.mxu0 0
    %3166 = vmatprep.subr.bf16.mxu0 0
    %3167 = vmatpush1.bf16.msra.mxu0 0
    %3168 = vmatprep.mubr.bf16.mxu0 0
    %3169 = vmatmul.mubr.bf16.gmra.mrb[0].mxu0 %v2908
    %v3170 = vpop.f32.mrb[0].mxu0
    %v3171 = vadd.f32 %v3130, %v3170
    %v3172 = vpop.f32.mrb[0].mxu0
    %v3173 = vadd.f32 %v3132, %v3172
    %v3174 = vpop.f32.mrb[0].mxu0
    %v3175 = vpop.f32.mrb[0].mxu0
    %3176 = vdwg.mxu0
    %3177 = vmatprep.subr.bf16.mxu0 0
    %3178 = vmatpush1.bf16.msra.mxu0 %v2654
    %3179 = vmatprep.subr.bf16.mxu0 0
    %3180 = vmatpush1.bf16.msra.mxu0 %v2661
    %3181 = vmatprep.subr.bf16.mxu0 0
    %3182 = vmatpush1.bf16.msra.mxu0 %v2668
    %3183 = vmatprep.subr.bf16.mxu0 0
    %3184 = vmatpush1.bf16.msra.mxu0 %v2675
    %3185 = vmatprep.subr.bf16.mxu0 0
    %3186 = vmatpush1.bf16.msra.mxu0 %v2682
    %3187 = vmatprep.subr.bf16.mxu0 0
    %3188 = vmatpush1.bf16.msra.mxu0 %v2689
    %3189 = vmatprep.subr.bf16.mxu0 0
    %3190 = vmatpush1.bf16.msra.mxu0 %v2696
    %3191 = vmatprep.subr.bf16.mxu0 0
    %3192 = vmatpush1.bf16.msra.mxu0 %v2703
    %3193 = vmatprep.subr.bf16.mxu0 0
    %3194 = vmatpush1.bf16.msra.mxu0 %v2710
    %3195 = vmatprep.subr.bf16.mxu0 0
    %3196 = vmatpush1.bf16.msra.mxu0 %v2717
    %3197 = vmatprep.subr.bf16.mxu0 0
    %3198 = vmatpush1.bf16.msra.mxu0 %v2724
    %3199 = vmatprep.subr.bf16.mxu0 0
    %3200 = vmatpush1.bf16.msra.mxu0 %v2731
    %3201 = vmatprep.subr.bf16.mxu0 0
    %3202 = vmatpush1.bf16.msra.mxu0 %v2738
    %3203 = vmatprep.subr.bf16.mxu0 0
    %3204 = vmatpush1.bf16.msra.mxu0 %v2745
    %3205 = vmatprep.subr.bf16.mxu0 0
    %3206 = vmatpush1.bf16.msra.mxu0 %v2752
    %3207 = vmatprep.subr.bf16.mxu0 0
    %3208 = vmatpush1.bf16.msra.mxu0 %v2759
    %3209 = vmatprep.mubr.bf16.mxu0 %v2039
    %3210 = vmatmul.mubr.bf16.gmra.mrb[0].mxu0 %v2038
    %v3211 = vpop.f32.mrb[0].mxu0
    %v3212 = vadd.f32 %v2222, %v3211
    %v3213 = vpop.f32.mrb[0].mxu0
    %v3214 = vpop.f32.mrb[0].mxu0
    %v3215 = vpop.f32.mrb[0].mxu0
    %3216 = vdwg.mxu0
    %3217 = vmatprep.subr.bf16.mxu0 0
    %3218 = vmatpush1.bf16.msra.mxu0 %v2766
    %3219 = vmatprep.subr.bf16.mxu0 0
    %3220 = vmatpush1.bf16.msra.mxu0 %v2773
    %3221 = vmatprep.subr.bf16.mxu0 0
    %3222 = vmatpush1.bf16.msra.mxu0 %v2929
    %3223 = vmatprep.subr.bf16.mxu0 0
    %3224 = vmatpush1.bf16.msra.mxu0 0
    %3225 = vmatprep.subr.bf16.mxu0 0
    %3226 = vmatpush1.bf16.msra.mxu0 0
    %3227 = vmatprep.subr.bf16.mxu0 0
    %3228 = vmatpush1.bf16.msra.mxu0 0
    %3229 = vmatprep.subr.bf16.mxu0 0
    %3230 = vmatpush1.bf16.msra.mxu0 0
    %3231 = vmatprep.subr.bf16.mxu0 0
    %3232 = vmatpush1.bf16.msra.mxu0 0
    %3233 = vmatprep.subr.bf16.mxu0 0
    %3234 = vmatpush1.bf16.msra.mxu0 0
    %3235 = vmatprep.subr.bf16.mxu0 0
    %3236 = vmatpush1.bf16.msra.mxu0 0
    %3237 = vmatprep.subr.bf16.mxu0 0
    %3238 = vmatpush1.bf16.msra.mxu0 0
    %3239 = vmatprep.subr.bf16.mxu0 0
    %3240 = vmatpush1.bf16.msra.mxu0 0
    %3241 = vmatprep.subr.bf16.mxu0 0
    %3242 = vmatpush1.bf16.msra.mxu0 0
    %3243 = vmatprep.subr.bf16.mxu0 0
    %3244 = vmatpush1.bf16.msra.mxu0 0
    %3245 = vmatprep.subr.bf16.mxu0 0
    %3246 = vmatpush1.bf16.msra.mxu0 0
    %3247 = vmatprep.subr.bf16.mxu0 0
    %3248 = vmatpush1.bf16.msra.mxu0 0
    %3249 = vmatprep.mubr.bf16.mxu0 0
    %3250 = vmatmul.mubr.bf16.gmra.mrb[0].mxu0 %v2908
    %v3251 = vpop.f32.mrb[0].mxu0
    %v3252 = vadd.f32 %v3212, %v3251
    %v3253 = vpop.f32.mrb[0].mxu0
    %v3254 = vpop.f32.mrb[0].mxu0
    %v3255 = vpop.f32.mrb[0].mxu0
    %3256 = vdwg.mxu0
    %3257 = vst [vmem:[#allocation2] sm:$0xff] %v3007
    %3258 = vst [vmem:[#allocation2 + $0x8] sm:$0xff] %v3009
    %3259 = vst [vmem:[#allocation2 + $0x10] sm:$0xff] %v3089
    %3260 = vst [vmem:[#allocation2 + $0x18] sm:$0xff] %v3091
    %3261 = vst [vmem:[#allocation2 + $0x20] sm:$0xff] %v3171
    %3262 = vst [vmem:[#allocation2 + $0x28] sm:$0xff] %v3173
    %3263 = vst.msk [vmem:[#allocation2 + $0x30] sm:$0xff] %vm1051, %v3252
    // Predicated region
    $region46: #{big_mnist_patch_selector_forward.1} parent=1 // pred_check
      _
    $region47: #{big_mnist_patch_selector_forward.1} parent=1 // pred_check_branch
      %3265 = sbr.rel (0) target = $region49
    $region48: #{big_mnist_patch_selector_forward.1} parent=1 // pred_region
      %s3267 = ssub.s32 896, 896
      %3268 = vsyncadd [#allocation3], %s3267
      %s3270 = sshll.u32 [#allocation2], 4
      %s3271 = int_to_ptr.vmem [resolvable:$true] %s3270
      %3273 = dma.vmem_to_hbm [thread:$0]  %s3271, 896, %s11, [#allocation3]
    $region49: #{big_mnist_patch_selector_forward.1} parent=1 // pred_fallthru
      _
    // Predicated region
    $region50: #{big_mnist_patch_selector_forward.1} parent=1 // pred_check
      _
    $region51: #{big_mnist_patch_selector_forward.1} parent=1 // pred_check_branch
      %3275 = sbr.rel (0) target = $region53
    $region52: #{big_mnist_patch_selector_forward.1} parent=1 // pred_region
      %3276 = dma.done [#allocation3], 896
    $region53: #{big_mnist_patch_selector_forward.1} parent=1 // pred_fallthru
      _
    %3277 = vsyncpa [#allocation3], 1

</llo_original>
